<compile_context>
chip_gen: v5e
topology: v5e:2x2
jax: 0.10.0
libtpu: 0.0.40
codegen_flags: <defaults>
</compile_context>

<pallas_src>
import functools

import jax
import jax.numpy as jnp
from jax import lax
from jax.experimental import pallas as pl
from jax.experimental.pallas import tpu as pltpu


# ----------------------------------------------------------------------------
# Kernel 1: branch1 k x k conv + bias + ReLU, im2col fused in VMEM
# ----------------------------------------------------------------------------
def _branch1_conv_kernel(xp_ref, w_ref, b_ref, o_ref, *, k, H, W):
    """One image per grid step.

    xp_ref : (1, H+2p, W+2p, Cin) bf16 padded NHWC image
    w_ref  : (r0, k*k*Cin)        bf16, columns ordered (kh, kw, cin)
    b_ref  : (r0, 1)              f32
    o_ref  : (1, r0, H*W)         bf16 channel-major output (lane-dense)
    """
    taps = []
    for kh in range(k):
        for kw in range(k):
            taps.append(xp_ref[0, kh:kh + H, kw:kw + W, :])        # (H, W, Cin)
    cols = jnp.concatenate(taps, axis=-1)                          # (H, W, k*k*Cin)
    # TODO(synk): the collapse-leading-dims reshape is cheapest when W % 8 == 0.
    cols = cols.reshape(H * W, cols.shape[-1])                     # (H*W, k*k*Cin)
    # transposed-output matmul (q @ k^T form) -> (r0, H*W), f32 acc on the MXU
    acc = lax.dot_general(w_ref[...], cols, (((1,), (1,)), ((), ())),
                          preferred_element_type=jnp.float32)
    acc = acc + b_ref[...]
    o_ref[0] = jnp.maximum(acc, 0.0).astype(o_ref.dtype)


def conv2d_branch1(xp, w1, b1, k, H, W):
    """xp: (B, H+2p, W+2p, Cin) bf16 -> (B, r0, H*W) bf16 (ReLU applied)."""
    B, Hp, Wp, C = xp.shape
    r0 = w1.shape[0]
    N = H * W
    return pl.pallas_call(
        functools.partial(_branch1_conv_kernel, k=k, H=H, W=W),
        out_shape=jax.ShapeDtypeStruct((B, r0, N), jnp.bfloat16),
        grid=(B,),
        in_specs=[
            pl.BlockSpec((1, Hp, Wp, C), lambda b: (b, 0, 0, 0)),
            pl.BlockSpec((r0, k * k * C), lambda b: (0, 0)),
            pl.BlockSpec((r0, 1), lambda b: (0, 0)),
        ],
        out_specs=pl.BlockSpec((1, r0, N), lambda b: (b, 0, 0)),
        compiler_params=pltpu.CompilerParams(dimension_semantics=("parallel",)),
    )(xp, w1, b1)


# ----------------------------------------------------------------------------
# Kernel 2: Conv1d_NN_Attn_V branch + fused internal 1x1 conv + ReLU
#           + fused final (split-weight) 1x1 reduce over both branches
# ----------------------------------------------------------------------------
def _nn_attn_reduce_kernel(x_ref, s_ref, sn_ref, w1d_ref, b1d_ref,
                           wpw2_ref, bpw2_ref, br1_ref, wr0_ref, wr1_ref,
                           bo_ref, o_ref, *, K, magnitude_type, fuse_pw):
    """One (batch, token-tile) per grid step.

    x_ref   : (1, tn, C1)        bf16 tokens
    s_ref   : (1, M,  C1)        bf16 samples
    sn_ref  : (1, 1, M)          f32  |s|^2 (precomputed, only used for 'distance')
    w1d_ref : (K, c1d_out, C1)   bf16 NN-conv weight, per-tap transposed
    b1d_ref : (c1d_out, 1)       f32
    wpw2_ref: (r1, c1d_out)      bf16 branch-internal 1x1 conv weight (transposed)
    bpw2_ref: (r1, 1)            f32
    br1_ref : (1, r0, tn)        bf16 branch1 activation (channel-major)
    wr0_ref : (out, r0)          bf16 final reduce weight, branch1 half (transposed)
    wr1_ref : (out, r1)          bf16 final reduce weight, branch2 half (transposed)
    bo_ref  : (out, 1)           f32
    o_ref   : (1, out, tn)       f32  flattened-NCHW output tile (lane-dense)
    """
    x = x_ref[0]                                     # (tn, C1) bf16
    s = s_ref[0]                                     # (M,  C1) bf16
    tn = x.shape[0]
    M = s.shape[0]

    # token-vs-sample magnitude on the MXU (bf16 in / f32 acc)
    xs = lax.dot_general(x, s, (((1,), (1,)), ((), ())),
                         preferred_element_type=jnp.float32)       # (tn, M)
    if magnitude_type == "distance":
        # squared distance = |x|^2 - 2 x.s + |s|^2 ; the per-token |x|^2 term
        # is constant along the reduced axis so it is dropped for selection.
        mag = sn_ref[0] - 2.0 * xs
        largest = False
        sentinel = jnp.float32(1e30)
    else:  # 'similarity'
        mag = xs
        largest = True
        sentinel = jnp.float32(-1e30)

    # Fold the lowest-index tie-break into the ordering key ONCE so each k
    # needs a single cross-lane reduction. eps is per-row scaled: it always
    # registers in f32 but stays far below the bf16 noise floor of `mag`.
    colf = lax.broadcasted_iota(jnp.int32, (tn, M), 1).astype(jnp.float32)
    row_scale = jnp.max(jnp.abs(mag), axis=1, keepdims=True)
    eps = row_scale * jnp.float32(2.0 ** -20) + jnp.float32(1e-30)
    d = mag - colf * eps if largest else mag + colf * eps

    ohs = []
    for _ in range(K):
        best = (jnp.max(d, axis=1, keepdims=True) if largest
                else jnp.min(d, axis=1, keepdims=True))
        onehot = d == best                           # exactly one hit per row
        ohs.append(onehot.astype(jnp.bfloat16))
        d = jnp.where(onehot, sentinel, d)
    oh = jnp.concatenate(ohs, axis=1)                # (tn, K*M) bf16

    # all-K sample value matrix (transposed): (c1d_out, K*M)
    sw_t = jnp.concatenate(
        [lax.dot_general(w1d_ref[k], s, (((1,), (1,)), ((), ())),
                         preferred_element_type=jnp.float32)
         for k in range(K)], axis=1).astype(jnp.bfloat16)

    # gather + K-tap conv as ONE MXU contraction: (c1d_out, tn)
    y = lax.dot_general(sw_t, oh, (((1,), (1,)), ((), ())),
                        preferred_element_type=jnp.float32)
    y = y + b1d_ref[...]
    if fuse_pw:
        # branch-internal 1x1 conv (out+2 -> out)
        y = jnp.dot(wpw2_ref[...], y.astype(jnp.bfloat16),
                    preferred_element_type=jnp.float32) + bpw2_ref[...]
    y = jnp.maximum(y, 0.0).astype(jnp.bfloat16)     # branch2 ReLU, (r1, tn)

    # fused final 1x1 reduce over both branches: (out, tn), already NCHW-major
    out = jnp.dot(wr0_ref[...], br1_ref[0], preferred_element_type=jnp.float32)
    out = out + jnp.dot(wr1_ref[...], y, preferred_element_type=jnp.float32)
    o_ref[0] = (out + bo_ref[...]).astype(o_ref.dtype)


def _pick_token_tile(n_tokens, n_samples):
    """Largest tile from {512, 256, 128} dividing N whose per-step (tile, M)
    f32 working set stays well inside VMEM (sized for 64 MiB-class parts)."""
    for t in (512, 256, 128):
        if n_tokens % t == 0 and t * max(n_samples, 128) * 4 * 8 <= 16 * 1024 * 1024:
            return t
    return n_tokens


def nn_attn_reduce(x2, xs, sn, br1, w1d, b1d, wpw2, bpw2, wr0, wr1, b_red, *,
                   K, magnitude_type, fuse_pw, token_tile):
    """x2: (B, N, C1) bf16 tokens; xs: (B, M, C1) bf16 samples -> (B, out, N) f32."""
    B, N, C1 = x2.shape
    M = xs.shape[1]
    c1d_out = w1d.shape[1]
    out_c, r0 = wr0.shape
    r1 = wr1.shape[1]
    tn = token_tile
    nt = N // tn
    kern = functools.partial(_nn_attn_reduce_kernel, K=K,
                             magnitude_type=magnitude_type, fuse_pw=fuse_pw)
    return pl.pallas_call(
        kern,
        out_shape=jax.ShapeDtypeStruct((B, out_c, N), jnp.float32),
        grid=(B, nt),
        in_specs=[
            pl.BlockSpec((1, tn, C1), lambda b, t: (b, t, 0)),        # tokens
            pl.BlockSpec((1, M, C1), lambda b, t: (b, 0, 0)),         # samples
            pl.BlockSpec((1, 1, M), lambda b, t: (b, 0, 0)),          # |s|^2
            pl.BlockSpec((K, c1d_out, C1), lambda b, t: (0, 0, 0)),   # NN-conv W^T
            pl.BlockSpec((c1d_out, 1), lambda b, t: (0, 0)),          # NN-conv b
            pl.BlockSpec((r1, c1d_out), lambda b, t: (0, 0)),         # internal pw W^T
            pl.BlockSpec((r1, 1), lambda b, t: (0, 0)),               # internal pw b
            pl.BlockSpec((1, r0, tn), lambda b, t: (b, 0, t)),        # branch1 act
            pl.BlockSpec((out_c, r0), lambda b, t: (0, 0)),           # reduce W0^T
            pl.BlockSpec((out_c, r1), lambda b, t: (0, 0)),           # reduce W1^T
            pl.BlockSpec((out_c, 1), lambda b, t: (0, 0)),            # reduce b
        ],
        out_specs=pl.BlockSpec((1, out_c, tn), lambda b, t: (b, 0, t)),
        compiler_params=pltpu.CompilerParams(
            dimension_semantics=("parallel", "parallel")),
    )(x2, xs, sn, w1d, b1d, wpw2, bpw2, br1, wr0, wr1, b_red)


# ----------------------------------------------------------------------------
# Module wrapper (glue in plain JAX)
# ----------------------------------------------------------------------------
class Conv2dConvNNAttnVBranching:
    def __init__(self, key, in_channels, out_channels, channel_ratio, kernel_size,
                 K, shuffle_pattern, shuffle_scale, samples, image_size,
                 magnitude_type, location_channels):
        assert shuffle_pattern == "NA", "only shuffle_pattern='NA' implemented"
        assert magnitude_type in ("distance", "similarity")
        assert isinstance(image_size, tuple) and len(image_size) == 2
        assert isinstance(samples, int) and samples > 0, "samples='all' not implemented"
        assert len(channel_ratio) == 2 and sum(channel_ratio) == 2 * out_channels
        assert channel_ratio[0] > 0 and channel_ratio[1] > 0, \
            "zero-width branch not implemented"  # TODO(synk): single-branch paths
        assert kernel_size % 2 == 1, "even kernel_size not implemented"
        assert K <= samples * samples, "K must be <= samples^2"

        self.in_channels = in_channels
        self.out_channels = out_channels
        self.channel_ratio = channel_ratio
        self.kernel_size = kernel_size
        self.K = K
        self.samples = samples
        self.sample_padding = 0
        self.magnitude_type = magnitude_type
        self.location_channels = location_channels

        r0, r1 = channel_ratio
        c1d_in = in_channels + (2 if location_channels else 0)
        c1d_out = r1 + (2 if location_channels else 0)
        self.c1d_in, self.c1d_out = c1d_in, c1d_out

        ks = jax.random.split(key, 8)
        sc = 0.1
        # branch1 kxk conv, stored transposed: (r0, k*k*Cin), cols ordered (kh, kw, cin)
        self.w1 = (sc * jax.random.normal(
            ks[0], (r0, kernel_size * kernel_size * in_channels), jnp.float32)
                   ).astype(jnp.bfloat16)
        self.b1 = sc * jax.random.normal(ks[1], (r0, 1), jnp.float32)
        # branch2 NN conv (Conv1d kernel=K, stride=K), per-tap transposed weights
        self.w1d = (sc * jax.random.normal(
            ks[2], (K, c1d_out, c1d_in), jnp.float32)).astype(jnp.bfloat16)
        self.b1d = sc * jax.random.normal(ks[3], (c1d_out, 1), jnp.float32)
        # branch2 internal 1x1 conv (out+2 -> out), transposed
        self.wpw2 = (sc * jax.random.normal(
            ks[4], (r1, c1d_out), jnp.float32)).astype(jnp.bfloat16)
        self.bpw2 = sc * jax.random.normal(ks[5], (r1, 1), jnp.float32)
        # final 1x1 reduce conv, split per branch and stored transposed
        w_red = sc * jax.random.normal(
            ks[6], (out_channels, 2 * out_channels), jnp.float32)
        self.w_red0 = w_red[:, :r0].astype(jnp.bfloat16)
        self.w_red1 = w_red[:, r0:].astype(jnp.bfloat16)
        self.b_red = sc * jax.random.normal(ks[7], (out_channels, 1), jnp.float32)

    def __call__(self, x_nchw):
        B, C, H, W = x_nchw.shape
        assert C == self.in_channels
        N = H * W
        k = self.kernel_size
        pad = (k - 1) // 2
        x_nhwc = jnp.transpose(x_nchw, (0, 2, 3, 1))

        # ---------------- branch 1: k x k conv + ReLU (Pallas) ----------------
        xp = jnp.pad(x_nhwc.astype(jnp.bfloat16),
                     ((0, 0), (pad, pad), (pad, pad), (0, 0)))
        br1 = conv2d_branch1(xp, self.w1, self.b1, k, H, W)     # (B, r0, N) bf16

        # ---------------- branch 2 inputs (tokens / samples) ------------------
        if self.location_channels:
            xg, yg = jnp.meshgrid(jnp.arange(H, dtype=jnp.float32),
                                  jnp.arange(W, dtype=jnp.float32), indexing="ij")
            denom = jnp.maximum(jnp.sqrt(xg * xg + yg * yg), 1e-12)  # F.normalize
            coords = jnp.stack([xg / denom, yg / denom], axis=-1)    # (H, W, 2)
            coords = jnp.broadcast_to(coords, (B, H, W, 2))
            x1 = jnp.concatenate([x_nhwc, coords], axis=-1)
        else:
            x1 = x_nhwc
        C1 = x1.shape[-1]

        sp = self.sample_padding
        xi = jnp.round(jnp.linspace(sp, H - sp - 1, self.samples)).astype(jnp.int32)
        yi = jnp.round(jnp.linspace(sp, W - sp - 1, self.samples)).astype(jnp.int32)
        xg2, yg2 = jnp.meshgrid(xi, yi, indexing="ij")
        x2 = x1.reshape(B, N, C1)                                # tokens  (B, N, C1)
        xs = x1[:, xg2.flatten(), yg2.flatten(), :]              # samples (B, M, C1)
        M = xs.shape[1]
        sn = jnp.sum(xs * xs, axis=-1).reshape(B, 1, M)          # f32 |s|^2

        # ---- branch 2 + internal pw + ReLU + fused final reduce (Pallas) ----
        tn = _pick_token_tile(N, M)
        out = nn_attn_reduce(
            x2.astype(jnp.bfloat16), xs.astype(jnp.bfloat16), sn, br1,
            self.w1d, self.b1d, self.wpw2, self.bpw2,
            self.w_red0, self.w_red1, self.b_red,
            K=self.K, magnitude_type=self.magnitude_type,
            fuse_pw=self.location_channels, token_tile=tn)       # (B, out, N) f32

        return out.reshape(B, self.out_channels, H, W)           # already NCHW


# ----------------------------------------------------------------------------
if __name__ == "__main__":
    key = jax.random.PRNGKey(0)
    k_x, k_p = jax.random.split(key)

    B, Cin, H, W = 2, 4, 16, 16
    out_channels = 8
    model = Conv2dConvNNAttnVBranching(
        k_p,
        in_channels=Cin,
        out_channels=out_channels,
        channel_ratio=(8, 8),
        kernel_size=3,
        K=3,
        shuffle_pattern="NA",
        shuffle_scale=2,
        samples=8,
        image_size=(H, W),
        magnitude_type="distance",
        location_channels=True,
    )

    x = jax.random.normal(k_x, (B, Cin, H, W), dtype=jnp.float32)
    y = model(x)
    jax.block_until_ready(y)
    assert y.shape == (B, out_channels, H, W), y.shape
    assert bool(jnp.all(jnp.isfinite(y)))
    print("KERNEL_OK")
</pallas_src>

<mosaic_0001>
module attributes {stable_mosaic.version = 11 : i64} {
  func.func @_branch1_conv_kernel(%arg0: i32, %arg1: memref<1x18x18x4xbf16, #tpu.memory_space<vmem>>, %arg2: memref<8x36xbf16, #tpu.memory_space<vmem>>, %arg3: memref<8x1xf32, #tpu.memory_space<vmem>>, %arg4: memref<1x8x256xbf16, #tpu.memory_space<vmem>>) attributes {dimension_semantics = [#tpu.dimension_semantics<parallel>], iteration_bounds = array<i64: 2>, scalar_prefetch = 0 : i64, scratch_operands = 0 : i64, tpu.core_type = #tpu.core_type<tc>, window_params = [{transform_indices = @transform_0, window_bounds = array<i64: 1, 18, 18, 4>}, {pipeline_mode = #tpu.pipeline_mode<synchronous>, transform_indices = @transform_1, window_bounds = array<i64: 8, 36>}, {pipeline_mode = #tpu.pipeline_mode<synchronous>, transform_indices = @transform_2, window_bounds = array<i64: 8, 1>}, {transform_indices = @transform_3, window_bounds = array<i64: 1, 8, 256>}]} {
    %c0 = arith.constant 0 : index
    %c0_0 = arith.constant 0 : index
    %c0_1 = arith.constant 0 : index
    %c0_2 = arith.constant 0 : index
    %0 = vector.load %arg1[%c0, %c0_0, %c0_1, %c0_2] : memref<1x18x18x4xbf16, #tpu.memory_space<vmem>>, vector<1x16x16x4xbf16>
    %1 = vector.shape_cast %0 : vector<1x16x16x4xbf16> to vector<16x16x4xbf16>
    %c0_3 = arith.constant 0 : index
    %c0_4 = arith.constant 0 : index
    %c1 = arith.constant 1 : index
    %c0_5 = arith.constant 0 : index
    %2 = vector.load %arg1[%c0_3, %c0_4, %c1, %c0_5] : memref<1x18x18x4xbf16, #tpu.memory_space<vmem>>, vector<1x16x16x4xbf16>
    %3 = vector.shape_cast %2 : vector<1x16x16x4xbf16> to vector<16x16x4xbf16>
    %c0_6 = arith.constant 0 : index
    %c0_7 = arith.constant 0 : index
    %c2 = arith.constant 2 : index
    %c0_8 = arith.constant 0 : index
    %4 = vector.load %arg1[%c0_6, %c0_7, %c2, %c0_8] : memref<1x18x18x4xbf16, #tpu.memory_space<vmem>>, vector<1x16x16x4xbf16>
    %5 = vector.shape_cast %4 : vector<1x16x16x4xbf16> to vector<16x16x4xbf16>
    %c0_9 = arith.constant 0 : index
    %c1_10 = arith.constant 1 : index
    %c0_11 = arith.constant 0 : index
    %c0_12 = arith.constant 0 : index
    %6 = vector.load %arg1[%c0_9, %c1_10, %c0_11, %c0_12] : memref<1x18x18x4xbf16, #tpu.memory_space<vmem>>, vector<1x16x16x4xbf16>
    %7 = vector.shape_cast %6 : vector<1x16x16x4xbf16> to vector<16x16x4xbf16>
    %c0_13 = arith.constant 0 : index
    %c1_14 = arith.constant 1 : index
    %c1_15 = arith.constant 1 : index
    %c0_16 = arith.constant 0 : index
    %8 = vector.load %arg1[%c0_13, %c1_14, %c1_15, %c0_16] : memref<1x18x18x4xbf16, #tpu.memory_space<vmem>>, vector<1x16x16x4xbf16>
    %9 = vector.shape_cast %8 : vector<1x16x16x4xbf16> to vector<16x16x4xbf16>
    %c0_17 = arith.constant 0 : index
    %c1_18 = arith.constant 1 : index
    %c2_19 = arith.constant 2 : index
    %c0_20 = arith.constant 0 : index
    %10 = vector.load %arg1[%c0_17, %c1_18, %c2_19, %c0_20] : memref<1x18x18x4xbf16, #tpu.memory_space<vmem>>, vector<1x16x16x4xbf16>
    %11 = vector.shape_cast %10 : vector<1x16x16x4xbf16> to vector<16x16x4xbf16>
    %c0_21 = arith.constant 0 : index
    %c2_22 = arith.constant 2 : index
    %c0_23 = arith.constant 0 : index
    %c0_24 = arith.constant 0 : index
    %12 = vector.load %arg1[%c0_21, %c2_22, %c0_23, %c0_24] : memref<1x18x18x4xbf16, #tpu.memory_space<vmem>>, vector<1x16x16x4xbf16>
    %13 = vector.shape_cast %12 : vector<1x16x16x4xbf16> to vector<16x16x4xbf16>
    %c0_25 = arith.constant 0 : index
    %c2_26 = arith.constant 2 : index
    %c1_27 = arith.constant 1 : index
    %c0_28 = arith.constant 0 : index
    %14 = vector.load %arg1[%c0_25, %c2_26, %c1_27, %c0_28] : memref<1x18x18x4xbf16, #tpu.memory_space<vmem>>, vector<1x16x16x4xbf16>
    %15 = vector.shape_cast %14 : vector<1x16x16x4xbf16> to vector<16x16x4xbf16>
    %c0_29 = arith.constant 0 : index
    %c2_30 = arith.constant 2 : index
    %c2_31 = arith.constant 2 : index
    %c0_32 = arith.constant 0 : index
    %16 = vector.load %arg1[%c0_29, %c2_30, %c2_31, %c0_32] : memref<1x18x18x4xbf16, #tpu.memory_space<vmem>>, vector<1x16x16x4xbf16>
    %17 = vector.shape_cast %16 : vector<1x16x16x4xbf16> to vector<16x16x4xbf16>
    %18 = tpu.concatenate %1, %3, %5, %7, %9, %11, %13, %15, %17 in 2 : vector<16x16x4xbf16>, vector<16x16x4xbf16>, vector<16x16x4xbf16>, vector<16x16x4xbf16>, vector<16x16x4xbf16>, vector<16x16x4xbf16>, vector<16x16x4xbf16>, vector<16x16x4xbf16>, vector<16x16x4xbf16> -> vector<16x16x36xbf16>
    %19 = vector.shape_cast %18 : vector<16x16x36xbf16> to vector<256x36xbf16>
    %c0_33 = arith.constant 0 : index
    %c0_34 = arith.constant 0 : index
    %20 = vector.load %arg2[%c0_33, %c0_34] : memref<8x36xbf16, #tpu.memory_space<vmem>>, vector<8x36xbf16>
    %cst = arith.constant dense<0.000000e+00> : vector<8x256xf32>
    %21 = tpu.matmul %20, %19, %cst {dimension_numbers = #tpu.dot_dimension_numbers<[1], [1], [0], [0], [0, 0, 1, 0], [], []>} : vector<8x36xbf16>, vector<256x36xbf16>, vector<8x256xf32> -> vector<8x256xf32>
    %c0_35 = arith.constant 0 : index
    %c0_36 = arith.constant 0 : index
    %22 = vector.load %arg3[%c0_35, %c0_36] : memref<8x1xf32, #tpu.memory_space<vmem>>, vector<8x1xf32>
    %23 = vector.broadcast %22 : vector<8x1xf32> to vector<8x256xf32>
    %24 = arith.addf %21, %23 : vector<8x256xf32>
    %cst_37 = arith.constant 0.000000e+00 : f32
    %25 = vector.broadcast %cst_37 : f32 to vector<8x256xf32>
    %26 = arith.maximumf %24, %25 : vector<8x256xf32>
    %27 = arith.truncf %26 : vector<8x256xf32> to vector<8x256xbf16>
    %c0_38 = arith.constant 0 : index
    %c0_39 = arith.constant 0 : index
    %c0_40 = arith.constant 0 : index
    %28 = vector.load %arg4[%c0_38, %c0_39, %c0_40] : memref<1x8x256xbf16, #tpu.memory_space<vmem>>, vector<1x8x256xbf16>
    %29 = vector.shape_cast %28 : vector<1x8x256xbf16> to vector<8x256xbf16>
    %30 = vector.shape_cast %27 : vector<8x256xbf16> to vector<1x8x256xbf16>
    tpu.vector_store %arg4[%c0_38, %c0_39, %c0_40], %30 {strides = array<i32>} : memref<1x8x256xbf16, #tpu.memory_space<vmem>>, vector<1x8x256xbf16>,
    return
  }
  func.func @transform_0(%arg0: i32) -> (i32, i32, i32, i32) {
    %c0_i32 = arith.constant 0 : i32
    %c0_i32_0 = arith.constant 0 : i32
    %c0_i32_1 = arith.constant 0 : i32
    %c0_i32_2 = arith.constant 0 : i32
    return %arg0, %c0_i32, %c0_i32_0, %c0_i32_1 : i32, i32, i32, i32
  }
  func.func @transform_1(%arg0: i32) -> (i32, i32) {
    %c0_i32 = arith.constant 0 : i32
    %c0_i32_0 = arith.constant 0 : i32
    %c0_i32_1 = arith.constant 0 : i32
    return %c0_i32, %c0_i32_0 : i32, i32
  }
  func.func @transform_2(%arg0: i32) -> (i32, i32) {
    %c0_i32 = arith.constant 0 : i32
    %c0_i32_0 = arith.constant 0 : i32
    %c0_i32_1 = arith.constant 0 : i32
    return %c0_i32, %c0_i32_0 : i32, i32
  }
  func.func @transform_3(%arg0: i32) -> (i32, i32, i32) {
    %c0_i32 = arith.constant 0 : i32
    %c0_i32_0 = arith.constant 0 : i32
    %c0_i32_1 = arith.constant 0 : i32
    return %arg0, %c0_i32, %c0_i32_0 : i32, i32, i32
  }
}

</mosaic_0001>

<llo_original>
// kernel: tpu_custom_call.1
$region0: #{tpu_custom_call.1}
  #allocation0 [shape = 'u32[]', space=smem, size = 0x4, offset = 0x4, fixed_abs, tag = 'smem constant byte address 0x4 - core index']
  #allocation1 [shape = 'u32[72,128]{1,0:T(1,128)}', space=vmem, size = 0x9000, scoped, tag = 'internal scratch']
  %s0 = inlined_call_operand.vmem [shape: bf16[2,18,18,4], index: 0, kind: input, shape index: {}]
  %s1 = inlined_call_operand.vmem [shape: bf16[8,36], index: 1, kind: input, shape index: {}]
  %s2 = inlined_call_operand.vmem [shape: f32[8,1], index: 2, kind: input, shape index: {}]
  %s3 = inlined_call_operand.hbm [shape: bf16[2,8,256], index: 3, kind: output, shape index: {}]
  %s4 = sld [smem:[#allocation0]]
  $region45: #{tpu_custom_call.1} parent=0
    _
  %s6 = ssub.s32 1, %s4
  %s7 = scalar_select 0, %s6, %s4
  $region1: #{tpu_custom_call.1} parent=0
    #allocation2 [shape = 'u8[8192]{0}', space=vmem, size = 0x2000, scoped, tag = 'output window, operand 0']
    #allocation3 [shape = 's32[2]{0}', space=sflag, size = 0x8, scoped, tag = 'scoped memory for tpu_custom_call.1']
    %8 = vsyncpa [#allocation3], 0
    %s9 = scalar_lea.sflag [#allocation3], 1
    %10 = vsyncpa %s9, 0
    loop: start=0, step=1, limit=4
    $region2: #{tpu_custom_call.1} parent=1 // loop_pre_header
      _
    $region3: #{tpu_custom_call.1} parent=1 // loop_header
      %s12 = sphi 0, %s16
      %p13 = scmp.ge.s32.totalorder %s12, 4
      %s22 = sphi 0, %s24
      %s25 = sphi 0, %s22
      %s26 = sphi 0, %s25
      %s42 = sphi 0, %s26
      %s46 = sphi 0, %s46
      %s48 = sphi 0, %s46
      %s49 = sphi 0, %s48
      %s63 = sphi 0, %s49
      %s67 = sphi 0, %s67
      %s69 = sphi 0, %s67
      %s70 = sphi 0, %s69
      %s84 = sphi 0, %s70
      %s90 = sphi 0, %s92
      %s93 = sphi 0, %s90
      %s94 = sphi 0, %s93
      %s110 = sphi 0, %s94
    $region4: #{tpu_custom_call.1} parent=1 // loop_header_branch
      %15 = sbr.rel (%p13) target = $region8
    $region5: #{tpu_custom_call.1} parent=1 // loop_body
      %s17 = ssub.s32 %s12, 1
      %s18 = ssub.s32 %s12, 2
      %s19 = sadd.s32 %s12, 1
      %s20 = ssub.s32 %s12, %s19
      %p21 = scmp.eq.s32.totalorder %s20, 0
      %s23 = sadd.s32 %s22, 1
      %s24 = scalar_select %p21, %s22, %s23
      %p27 = pneg %p21
      %p28 = scmp.eq.s32.totalorder %s12, 1
      %p29 = por %p27, %p28
      %p30 = scmp.ne.s32.totalorder %s22, %s25
      %p31 = scmp.eq.s32.totalorder %s12, 0
      %p32 = por %p30, %p31
      %p33 = scmp.ne.s32.totalorder %s22, %s25
      %p34 = scmp.eq.s32.totalorder %s17, 1
      %p35 = por %p33, %p34
      %p36 = scmp.ne.s32.totalorder %s25, %s26
      %p37 = scmp.eq.s32.totalorder %s17, 0
      %p38 = por %p36, %p37
      %p39 = scmp.ne.s32.totalorder %s25, %s26
      %p40 = scmp.eq.s32.totalorder %s18, 1
      %p41 = por %p39, %p40
      %p43 = scmp.ne.s32.totalorder %s26, %s42
      %p44 = scmp.eq.s32.totalorder %s18, 0
      %p45 = por %p43, %p44
      %s47 = sadd.s32 %s46, 1
      %p50 = scmp.eq.s32.totalorder %s12, 1
      %p51 = scmp.ne.s32.totalorder %s46, %s48
      %p52 = scmp.eq.s32.totalorder %s12, 0
      %p53 = por %p51, %p52
      %p54 = scmp.ne.s32.totalorder %s46, %s48
      %p55 = scmp.eq.s32.totalorder %s17, 1
      %p56 = por %p54, %p55
      %p57 = scmp.ne.s32.totalorder %s48, %s49
      %p58 = scmp.eq.s32.totalorder %s17, 0
      %p59 = por %p57, %p58
      %p60 = scmp.ne.s32.totalorder %s48, %s49
      %p61 = scmp.eq.s32.totalorder %s18, 1
      %p62 = por %p60, %p61
      %p64 = scmp.ne.s32.totalorder %s49, %s63
      %p65 = scmp.eq.s32.totalorder %s18, 0
      %p66 = por %p64, %p65
      %s68 = sadd.s32 %s67, 1
      %p71 = scmp.eq.s32.totalorder %s12, 1
      %p72 = scmp.ne.s32.totalorder %s67, %s69
      %p73 = scmp.eq.s32.totalorder %s12, 0
      %p74 = por %p72, %p73
      %p75 = scmp.ne.s32.totalorder %s67, %s69
      %p76 = scmp.eq.s32.totalorder %s17, 1
      %p77 = por %p75, %p76
      %p78 = scmp.ne.s32.totalorder %s69, %s70
      %p79 = scmp.eq.s32.totalorder %s17, 0
      %p80 = por %p78, %p79
      %p81 = scmp.ne.s32.totalorder %s69, %s70
      %p82 = scmp.eq.s32.totalorder %s18, 1
      %p83 = por %p81, %p82
      %p85 = scmp.ne.s32.totalorder %s70, %s84
      %p86 = scmp.eq.s32.totalorder %s18, 0
      %p87 = por %p85, %p86
      %s88 = ssub.s32 %s12, %s19
      %p89 = scmp.eq.s32.totalorder %s88, 0
      %s91 = sadd.s32 %s90, 1
      %s92 = scalar_select %p89, %s90, %s91
      %p95 = pneg %p89
      %p96 = scmp.eq.s32.totalorder %s12, 1
      %p97 = por %p95, %p96
      %p98 = scmp.ne.s32.totalorder %s90, %s93
      %p99 = scmp.eq.s32.totalorder %s12, 0
      %p100 = por %p98, %p99
      %p101 = scmp.ne.s32.totalorder %s90, %s93
      %p102 = scmp.eq.s32.totalorder %s17, 1
      %p103 = por %p101, %p102
      %p104 = scmp.ne.s32.totalorder %s93, %s94
      %p105 = scmp.eq.s32.totalorder %s17, 0
      %p106 = por %p104, %p105
      %p107 = scmp.ne.s32.totalorder %s93, %s94
      %p108 = scmp.eq.s32.totalorder %s18, 1
      %p109 = por %p107, %p108
      %p111 = scmp.ne.s32.totalorder %s94, %s110
      %p112 = scmp.eq.s32.totalorder %s18, 0
      %p113 = por %p111, %p112
      %p114 = scmp.le.s32.totalorder 1, %s12
      %p115 = scmp.lt.s32.totalorder %s12, 3
      %p116 = pnand %p114, %p115
      %p117 = pneg %p116
      // Predicated region
      $region9: #{tpu_custom_call.1} parent=5 // pred_check
        _
      $region10: #{tpu_custom_call.1} parent=5 // pred_check_branch
        %119 = sbr.rel (%p116) target = $region12
      $region11: #{tpu_custom_call.1} parent=5 // pred_region
        %s120 = ssub.s32 %s12, 1
        // Predicated region
        $region13: #{tpu_custom_call.1} parent=11 // pred_check
          %p121 = pneg %p59
        $region14: #{tpu_custom_call.1} parent=11 // pred_check_branch
          %123 = sbr.rel (%p121) target = $region16
        $region15: #{tpu_custom_call.1} parent=11 // pred_region
          _
        $region16: #{tpu_custom_call.1} parent=11 // pred_fallthru
          _
        // Predicated region
        $region17: #{tpu_custom_call.1} parent=11 // pred_check
          %p124 = pneg %p80
        $region18: #{tpu_custom_call.1} parent=11 // pred_check_branch
          %126 = sbr.rel (%p124) target = $region20
        $region19: #{tpu_custom_call.1} parent=11 // pred_region
          _
        $region20: #{tpu_custom_call.1} parent=11 // pred_fallthru
          _
      $region12: #{tpu_custom_call.1} parent=5 // pred_fallthru
        _
      %p127 = scmp.lt.s32.totalorder %s12, 2
      // Predicated region
      $region21: #{tpu_custom_call.1} parent=5 // pred_check
        %p128 = pneg %p127
      $region22: #{tpu_custom_call.1} parent=5 // pred_check_branch
        %130 = sbr.rel (%p128) target = $region24
      $region23: #{tpu_custom_call.1} parent=5 // pred_region
        // Predicated region
        $region25: #{tpu_custom_call.1} parent=23 // pred_check
          %p131 = pneg %p32
        $region26: #{tpu_custom_call.1} parent=23 // pred_check_branch
          %133 = sbr.rel (%p131) target = $region28
        $region27: #{tpu_custom_call.1} parent=23 // pred_region
          %p134 = scmp.lt.s32.totalorder %s12, 1
          %s135 = scalar_select %p134, %s12, 1
          %s136 = smul.addr %s135, 54
          %s137 = smul.addr %s136, 4
          %s138 = scalar_lea.vmem %s0, %s137
        $region28: #{tpu_custom_call.1} parent=23 // pred_fallthru
          _
      $region24: #{tpu_custom_call.1} parent=5 // pred_fallthru
        _
      %p139 = scmp.le.s32.totalorder 1, %s12
      %p140 = scmp.lt.s32.totalorder %s12, 3
      %p141 = pnand %p139, %p140
      %p142 = pneg %p141
      // Predicated region
      $region29: #{tpu_custom_call.1} parent=5 // pred_check
        _
      $region30: #{tpu_custom_call.1} parent=5 // pred_check_branch
        %144 = sbr.rel (%p141) target = $region32
      $region31: #{tpu_custom_call.1} parent=5 // pred_region
        %s145 = ssub.s32 %s12, 1
        %p146 = scmp.lt.s32.totalorder %s17, 1
        %s147 = scalar_select %p146, %s17, 1
        %s148 = smul.addr %s147, 54
        %s149 = smul.addr %s148, 4
        %s150 = scalar_lea.vmem %s0, %s149
        %p151 = pneg %p38
        %p152 = pneg %p35
        %p153 = pneg %p59
        %p154 = pneg %p56
        %p155 = pneg %p80
        %p156 = pneg %p77
        %p157 = pneg %p106
        %p158 = pneg %p103
        %s159 = sand.u32 %s93, 1
        %s160 = scalar_lea.sflag [#allocation3], %s159
        %s161 = sand.u32 %s93, 1
        %s162 = smul.addr %s161, 8
        %s163 = scalar_lea.vmem [#allocation2], %s162
        %p164 = scmp.lt.s32.totalorder %s17, 1
        %s165 = scalar_select %p164, %s17, 1
        %s166 = smul.addr %s165, 54
        %s167 = smul.addr %s166, 4
        %s168 = scalar_lea.vmem %s0, %s167
        %v169 = vld [vmem:[%s168] sm:$0xf]
        %v170 = vld [vmem:[%s168 + $0x4] sm:$0xf]
        %v171 = vld [vmem:[%s168 + $0xc] sm:$0xf]
        %v172 = vld [vmem:[%s168 + $0x10] sm:$0xf]
        %v173 = vld [vmem:[%s168 + $0x18] sm:$0xf]
        %v174 = vld [vmem:[%s168 + $0x1c] sm:$0xf]
        %v175 = vld [vmem:[%s168 + $0x24] sm:$0xf]
        %v176 = vld [vmem:[%s168 + $0x28] sm:$0xf]
        %v177 = vld [vmem:[%s168 + $0x30] sm:$0xf]
        %v178 = vld [vmem:[%s168 + $0x34] sm:$0xf]
        %v179 = vld [vmem:[%s168 + $0x3c] sm:$0xf]
        %v180 = vld [vmem:[%s168 + $0x40] sm:$0xf]
        %v181 = vld [vmem:[%s168 + $0x48] sm:$0xf]
        %v182 = vld [vmem:[%s168 + $0x4c] sm:$0xf]
        %v183 = vld [vmem:[%s168 + $0x54] sm:$0xf]
        %v184 = vld [vmem:[%s168 + $0x58] sm:$0xf]
        %v185 = vld [vmem:[%s168 + $0x60] sm:$0xf]
        %v186 = vld [vmem:[%s168 + $0x64] sm:$0xf]
        %v187 = vld [vmem:[%s168 + $0x6c] sm:$0xf]
        %v188 = vld [vmem:[%s168 + $0x70] sm:$0xf]
        %v189 = vld [vmem:[%s168 + $0x78] sm:$0xf]
        %v190 = vld [vmem:[%s168 + $0x7c] sm:$0xf]
        %v191 = vld [vmem:[%s168 + $0x84] sm:$0xf]
        %v192 = vld [vmem:[%s168 + $0x88] sm:$0xf]
        %v193 = vld [vmem:[%s168 + $0x90] sm:$0xf]
        %v194 = vld [vmem:[%s168 + $0x94] sm:$0xf]
        %v195 = vld [vmem:[%s168 + $0x9c] sm:$0xf]
        %v196 = vld [vmem:[%s168 + $0xa0] sm:$0xf]
        %v197 = vld [vmem:[%s168 + $0xa8] sm:$0xf]
        %v198 = vld [vmem:[%s168 + $0xac] sm:$0xf]
        %v199 = vld [vmem:[%s168 + $0xb4] sm:$0xf]
        %v200 = vld [vmem:[%s168 + $0xb8] sm:$0xf]
        %v201 = vld [vmem:[%s168 + $0x8] sm:$0x1]
        %v202 = vld [vmem:[%s168 + $0x14] sm:$0x1]
        %v203 = vld [vmem:[%s168 + $0x20] sm:$0x1]
        %v204 = vld [vmem:[%s168 + $0x2c] sm:$0x1]
        %v205 = vld [vmem:[%s168 + $0x38] sm:$0x1]
        %v206 = vld [vmem:[%s168 + $0x44] sm:$0x1]
        %v207 = vld [vmem:[%s168 + $0x50] sm:$0x1]
        %v208 = vld [vmem:[%s168 + $0x5c] sm:$0x1]
        %v209 = vld [vmem:[%s168 + $0x68] sm:$0x1]
        %v210 = vld [vmem:[%s168 + $0x74] sm:$0x1]
        %v211 = vld [vmem:[%s168 + $0x80] sm:$0x1]
        %v212 = vld [vmem:[%s168 + $0x8c] sm:$0x1]
        %v213 = vld [vmem:[%s168 + $0x98] sm:$0x1]
        %v214 = vld [vmem:[%s168 + $0xa4] sm:$0x1]
        %v215 = vld [vmem:[%s168 + $0xb0] sm:$0x1]
        %v216 = vld [vmem:[%s168 + $0xbc] sm:$0x1]
        %v217 = vld [vmem:[%s168] sm:$0xe]
        %v218 = vld [vmem:[%s168 + $0xc] sm:$0xe]
        %v219 = vld [vmem:[%s168 + $0x18] sm:$0xe]
        %v220 = vld [vmem:[%s168 + $0x24] sm:$0xe]
        %v221 = vld [vmem:[%s168 + $0x30] sm:$0xe]
        %v222 = vld [vmem:[%s168 + $0x3c] sm:$0xe]
        %v223 = vld [vmem:[%s168 + $0x48] sm:$0xe]
        %v224 = vld [vmem:[%s168 + $0x54] sm:$0xe]
        %v225 = vld [vmem:[%s168 + $0x60] sm:$0xe]
        %v226 = vld [vmem:[%s168 + $0x6c] sm:$0xe]
        %v227 = vld [vmem:[%s168 + $0x78] sm:$0xe]
        %v228 = vld [vmem:[%s168 + $0x84] sm:$0xe]
        %v229 = vld [vmem:[%s168 + $0x90] sm:$0xe]
        %v230 = vld [vmem:[%s168 + $0x9c] sm:$0xe]
        %v231 = vld [vmem:[%s168 + $0xa8] sm:$0xe]
        %v232 = vld [vmem:[%s168 + $0xb4] sm:$0xe]
        %s233 = scalar_lea.vmem %s168, 12
        %v234 = vld [vmem:[%s233] sm:$0xf]
        %v235 = vld [vmem:[%s233 + $0x4] sm:$0xf]
        %v236 = vld [vmem:[%s233 + $0xc] sm:$0xf]
        %v237 = vld [vmem:[%s233 + $0x10] sm:$0xf]
        %v238 = vld [vmem:[%s233 + $0x18] sm:$0xf]
        %v239 = vld [vmem:[%s233 + $0x1c] sm:$0xf]
        %v240 = vld [vmem:[%s233 + $0x24] sm:$0xf]
        %v241 = vld [vmem:[%s233 + $0x28] sm:$0xf]
        %v242 = vld [vmem:[%s233 + $0x30] sm:$0xf]
        %v243 = vld [vmem:[%s233 + $0x34] sm:$0xf]
        %v244 = vld [vmem:[%s233 + $0x3c] sm:$0xf]
        %v245 = vld [vmem:[%s233 + $0x40] sm:$0xf]
        %v246 = vld [vmem:[%s233 + $0x48] sm:$0xf]
        %v247 = vld [vmem:[%s233 + $0x4c] sm:$0xf]
        %v248 = vld [vmem:[%s233 + $0x54] sm:$0xf]
        %v249 = vld [vmem:[%s233 + $0x58] sm:$0xf]
        %v250 = vld [vmem:[%s233 + $0x60] sm:$0xf]
        %v251 = vld [vmem:[%s233 + $0x64] sm:$0xf]
        %v252 = vld [vmem:[%s233 + $0x6c] sm:$0xf]
        %v253 = vld [vmem:[%s233 + $0x70] sm:$0xf]
        %v254 = vld [vmem:[%s233 + $0x78] sm:$0xf]
        %v255 = vld [vmem:[%s233 + $0x7c] sm:$0xf]
        %v256 = vld [vmem:[%s233 + $0x84] sm:$0xf]
        %v257 = vld [vmem:[%s233 + $0x88] sm:$0xf]
        %v258 = vld [vmem:[%s233 + $0x90] sm:$0xf]
        %v259 = vld [vmem:[%s233 + $0x94] sm:$0xf]
        %v260 = vld [vmem:[%s233 + $0x9c] sm:$0xf]
        %v261 = vld [vmem:[%s233 + $0xa0] sm:$0xf]
        %v262 = vld [vmem:[%s233 + $0xa8] sm:$0xf]
        %v263 = vld [vmem:[%s233 + $0xac] sm:$0xf]
        %v264 = vld [vmem:[%s233 + $0xb4] sm:$0xf]
        %v265 = vld [vmem:[%s233 + $0xb8] sm:$0xf]
        %v266 = vld [vmem:[%s233 + $0x8] sm:$0x1]
        %v267 = vld [vmem:[%s233 + $0x14] sm:$0x1]
        %v268 = vld [vmem:[%s233 + $0x20] sm:$0x1]
        %v269 = vld [vmem:[%s233 + $0x2c] sm:$0x1]
        %v270 = vld [vmem:[%s233 + $0x38] sm:$0x1]
        %v271 = vld [vmem:[%s233 + $0x44] sm:$0x1]
        %v272 = vld [vmem:[%s233 + $0x50] sm:$0x1]
        %v273 = vld [vmem:[%s233 + $0x5c] sm:$0x1]
        %v274 = vld [vmem:[%s233 + $0x68] sm:$0x1]
        %v275 = vld [vmem:[%s233 + $0x74] sm:$0x1]
        %v276 = vld [vmem:[%s233 + $0x80] sm:$0x1]
        %v277 = vld [vmem:[%s233 + $0x8c] sm:$0x1]
        %v278 = vld [vmem:[%s233 + $0x98] sm:$0x1]
        %v279 = vld [vmem:[%s233 + $0xa4] sm:$0x1]
        %v280 = vld [vmem:[%s233 + $0xb0] sm:$0x1]
        %v281 = vld [vmem:[%s233 + $0xbc] sm:$0x1]
        %v282 = vld [vmem:[%s233] sm:$0xe]
        %v283 = vld [vmem:[%s233 + $0xc] sm:$0xe]
        %v284 = vld [vmem:[%s233 + $0x18] sm:$0xe]
        %v285 = vld [vmem:[%s233 + $0x24] sm:$0xe]
        %v286 = vld [vmem:[%s233 + $0x30] sm:$0xe]
        %v287 = vld [vmem:[%s233 + $0x3c] sm:$0xe]
        %v288 = vld [vmem:[%s233 + $0x48] sm:$0xe]
        %v289 = vld [vmem:[%s233 + $0x54] sm:$0xe]
        %v290 = vld [vmem:[%s233 + $0x60] sm:$0xe]
        %v291 = vld [vmem:[%s233 + $0x6c] sm:$0xe]
        %v292 = vld [vmem:[%s233 + $0x78] sm:$0xe]
        %v293 = vld [vmem:[%s233 + $0x84] sm:$0xe]
        %v294 = vld [vmem:[%s233 + $0x90] sm:$0xe]
        %v295 = vld [vmem:[%s233 + $0x9c] sm:$0xe]
        %v296 = vld [vmem:[%s233 + $0xa8] sm:$0xe]
        %v297 = vld [vmem:[%s233 + $0xb4] sm:$0xe]
        %s298 = scalar_lea.vmem %s168, 24
        %v299 = vld [vmem:[%s298] sm:$0xf]
        %v300 = vld [vmem:[%s298 + $0x4] sm:$0xf]
        %v301 = vld [vmem:[%s298 + $0xc] sm:$0xf]
        %v302 = vld [vmem:[%s298 + $0x10] sm:$0xf]
        %v303 = vld [vmem:[%s298 + $0x18] sm:$0xf]
        %v304 = vld [vmem:[%s298 + $0x1c] sm:$0xf]
        %v305 = vld [vmem:[%s298 + $0x24] sm:$0xf]
        %v306 = vld [vmem:[%s298 + $0x28] sm:$0xf]
        %v307 = vld [vmem:[%s298 + $0x30] sm:$0xf]
        %v308 = vld [vmem:[%s298 + $0x34] sm:$0xf]
        %v309 = vld [vmem:[%s298 + $0x3c] sm:$0xf]
        %v310 = vld [vmem:[%s298 + $0x40] sm:$0xf]
        %v311 = vld [vmem:[%s298 + $0x48] sm:$0xf]
        %v312 = vld [vmem:[%s298 + $0x4c] sm:$0xf]
        %v313 = vld [vmem:[%s298 + $0x54] sm:$0xf]
        %v314 = vld [vmem:[%s298 + $0x58] sm:$0xf]
        %v315 = vld [vmem:[%s298 + $0x60] sm:$0xf]
        %v316 = vld [vmem:[%s298 + $0x64] sm:$0xf]
        %v317 = vld [vmem:[%s298 + $0x6c] sm:$0xf]
        %v318 = vld [vmem:[%s298 + $0x70] sm:$0xf]
        %v319 = vld [vmem:[%s298 + $0x78] sm:$0xf]
        %v320 = vld [vmem:[%s298 + $0x7c] sm:$0xf]
        %v321 = vld [vmem:[%s298 + $0x84] sm:$0xf]
        %v322 = vld [vmem:[%s298 + $0x88] sm:$0xf]
        %v323 = vld [vmem:[%s298 + $0x90] sm:$0xf]
        %v324 = vld [vmem:[%s298 + $0x94] sm:$0xf]
        %v325 = vld [vmem:[%s298 + $0x9c] sm:$0xf]
        %v326 = vld [vmem:[%s298 + $0xa0] sm:$0xf]
        %v327 = vld [vmem:[%s298 + $0xa8] sm:$0xf]
        %v328 = vld [vmem:[%s298 + $0xac] sm:$0xf]
        %v329 = vld [vmem:[%s298 + $0xb4] sm:$0xf]
        %v330 = vld [vmem:[%s298 + $0xb8] sm:$0xf]
        %v331 = vld [vmem:[%s298 + $0x8] sm:$0x1]
        %v332 = vld [vmem:[%s298 + $0x14] sm:$0x1]
        %v333 = vld [vmem:[%s298 + $0x20] sm:$0x1]
        %v334 = vld [vmem:[%s298 + $0x2c] sm:$0x1]
        %v335 = vld [vmem:[%s298 + $0x38] sm:$0x1]
        %v336 = vld [vmem:[%s298 + $0x44] sm:$0x1]
        %v337 = vld [vmem:[%s298 + $0x50] sm:$0x1]
        %v338 = vld [vmem:[%s298 + $0x5c] sm:$0x1]
        %v339 = vld [vmem:[%s298 + $0x68] sm:$0x1]
        %v340 = vld [vmem:[%s298 + $0x74] sm:$0x1]
        %v341 = vld [vmem:[%s298 + $0x80] sm:$0x1]
        %v342 = vld [vmem:[%s298 + $0x8c] sm:$0x1]
        %v343 = vld [vmem:[%s298 + $0x98] sm:$0x1]
        %v344 = vld [vmem:[%s298 + $0xa4] sm:$0x1]
        %v345 = vld [vmem:[%s298 + $0xb0] sm:$0x1]
        %v346 = vld [vmem:[%s298 + $0xbc] sm:$0x1]
        %v347 = vld [vmem:[%s298] sm:$0xe]
        %v348 = vld [vmem:[%s298 + $0xc] sm:$0xe]
        %v349 = vld [vmem:[%s298 + $0x18] sm:$0xe]
        %v350 = vld [vmem:[%s298 + $0x24] sm:$0xe]
        %v351 = vld [vmem:[%s298 + $0x30] sm:$0xe]
        %v352 = vld [vmem:[%s298 + $0x3c] sm:$0xe]
        %v353 = vld [vmem:[%s298 + $0x48] sm:$0xe]
        %v354 = vld [vmem:[%s298 + $0x54] sm:$0xe]
        %v355 = vld [vmem:[%s298 + $0x60] sm:$0xe]
        %v356 = vld [vmem:[%s298 + $0x6c] sm:$0xe]
        %v357 = vld [vmem:[%s298 + $0x78] sm:$0xe]
        %v358 = vld [vmem:[%s298 + $0x84] sm:$0xe]
        %v359 = vld [vmem:[%s298 + $0x90] sm:$0xe]
        %v360 = vld [vmem:[%s298 + $0x9c] sm:$0xe]
        %v361 = vld [vmem:[%s298 + $0xa8] sm:$0xe]
        %v362 = vld [vmem:[%s298 + $0xb4] sm:$0xe]
        %v395 = vunpack.c.l.b16 %v169
        %v396 = vunpack.c.l.b16 %v170
        %v397 = vunpack.c.l.b16 %v171
        %v398 = vunpack.c.l.b16 %v172
        %v399 = vunpack.c.l.b16 %v173
        %v400 = vunpack.c.l.b16 %v174
        %v401 = vunpack.c.l.b16 %v175
        %v402 = vunpack.c.l.b16 %v176
        %v403 = vunpack.c.l.b16 %v177
        %v404 = vunpack.c.l.b16 %v178
        %v405 = vunpack.c.l.b16 %v179
        %v406 = vunpack.c.l.b16 %v180
        %v407 = vunpack.c.l.b16 %v181
        %v408 = vunpack.c.l.b16 %v182
        %v409 = vunpack.c.l.b16 %v183
        %v410 = vunpack.c.l.b16 %v184
        %v411 = vunpack.c.l.b16 %v185
        %v412 = vunpack.c.l.b16 %v186
        %v413 = vunpack.c.l.b16 %v187
        %v414 = vunpack.c.l.b16 %v188
        %v415 = vunpack.c.l.b16 %v189
        %v416 = vunpack.c.l.b16 %v190
        %v417 = vunpack.c.l.b16 %v191
        %v418 = vunpack.c.l.b16 %v192
        %v419 = vunpack.c.l.b16 %v193
        %v420 = vunpack.c.l.b16 %v194
        %v421 = vunpack.c.l.b16 %v195
        %v422 = vunpack.c.l.b16 %v196
        %v423 = vunpack.c.l.b16 %v197
        %v424 = vunpack.c.l.b16 %v198
        %v425 = vunpack.c.l.b16 %v199
        %v426 = vunpack.c.l.b16 %v200
        %v427 = vpack.c.b16 %v396, %v395
        %v428 = vpack.c.b16 %v398, %v397
        %v429 = vpack.c.b16 %v400, %v399
        %v430 = vpack.c.b16 %v402, %v401
        %v431 = vpack.c.b16 %v404, %v403
        %v432 = vpack.c.b16 %v406, %v405
        %v433 = vpack.c.b16 %v408, %v407
        %v434 = vpack.c.b16 %v410, %v409
        %v435 = vpack.c.b16 %v412, %v411
        %v436 = vpack.c.b16 %v414, %v413
        %v437 = vpack.c.b16 %v416, %v415
        %v438 = vpack.c.b16 %v418, %v417
        %v439 = vpack.c.b16 %v420, %v419
        %v440 = vpack.c.b16 %v422, %v421
        %v441 = vpack.c.b16 %v424, %v423
        %v442 = vpack.c.b16 %v426, %v425
        %v459 = vunpack.c.l.b16 %v201
        %v460 = vunpack.c.l.b16 %v202
        %v461 = vunpack.c.l.b16 %v203
        %v462 = vunpack.c.l.b16 %v204
        %v463 = vunpack.c.l.b16 %v205
        %v464 = vunpack.c.l.b16 %v206
        %v465 = vunpack.c.l.b16 %v207
        %v466 = vunpack.c.l.b16 %v208
        %v467 = vunpack.c.l.b16 %v209
        %v468 = vunpack.c.l.b16 %v210
        %v469 = vunpack.c.l.b16 %v211
        %v470 = vunpack.c.l.b16 %v212
        %v471 = vunpack.c.l.b16 %v213
        %v472 = vunpack.c.l.b16 %v214
        %v473 = vunpack.c.l.b16 %v215
        %v474 = vunpack.c.l.b16 %v216
        %v475 = vpack.c.b16 %v459, %v459
        %v476 = vpack.c.b16 %v460, %v460
        %v477 = vpack.c.b16 %v461, %v461
        %v478 = vpack.c.b16 %v462, %v462
        %v479 = vpack.c.b16 %v463, %v463
        %v480 = vpack.c.b16 %v464, %v464
        %v481 = vpack.c.b16 %v465, %v465
        %v482 = vpack.c.b16 %v466, %v466
        %v483 = vpack.c.b16 %v467, %v467
        %v484 = vpack.c.b16 %v468, %v468
        %v485 = vpack.c.b16 %v469, %v469
        %v486 = vpack.c.b16 %v470, %v470
        %v487 = vpack.c.b16 %v471, %v471
        %v488 = vpack.c.b16 %v472, %v472
        %v489 = vpack.c.b16 %v473, %v473
        %v490 = vpack.c.b16 %v474, %v474
        %vm491 = vsmask.f32 7424
        %v493 = vshrl.u32 %v427, 16
        %v495 = vshll.u32 %v427, 16
        %v497 = vrot.slane %v495, 1
        %v498 = vor.u32 %v493, %v497
        %v500 = vshll.u32 %v475, 16
        %v502 = vrot.slane %v500, 1
        %v503 = vsel %vm491, %v498, %v502
        %v505 = vshrl.u32 %v428, 16
        %v507 = vshll.u32 %v428, 16
        %v509 = vrot.slane %v507, 1
        %v510 = vor.u32 %v505, %v509
        %v512 = vshll.u32 %v476, 16
        %v514 = vrot.slane %v512, 1
        %v515 = vsel %vm491, %v510, %v514
        %v517 = vshrl.u32 %v429, 16
        %v519 = vshll.u32 %v429, 16
        %v521 = vrot.slane %v519, 1
        %v522 = vor.u32 %v517, %v521
        %v524 = vshll.u32 %v477, 16
        %v526 = vrot.slane %v524, 1
        %v527 = vsel %vm491, %v522, %v526
        %v529 = vshrl.u32 %v430, 16
        %v531 = vshll.u32 %v430, 16
        %v533 = vrot.slane %v531, 1
        %v534 = vor.u32 %v529, %v533
        %v536 = vshll.u32 %v478, 16
        %v538 = vrot.slane %v536, 1
        %v539 = vsel %vm491, %v534, %v538
        %v541 = vshrl.u32 %v431, 16
        %v543 = vshll.u32 %v431, 16
        %v545 = vrot.slane %v543, 1
        %v546 = vor.u32 %v541, %v545
        %v548 = vshll.u32 %v479, 16
        %v550 = vrot.slane %v548, 1
        %v551 = vsel %vm491, %v546, %v550
        %v553 = vshrl.u32 %v432, 16
        %v555 = vshll.u32 %v432, 16
        %v557 = vrot.slane %v555, 1
        %v558 = vor.u32 %v553, %v557
        %v560 = vshll.u32 %v480, 16
        %v562 = vrot.slane %v560, 1
        %v563 = vsel %vm491, %v558, %v562
        %v565 = vshrl.u32 %v433, 16
        %v567 = vshll.u32 %v433, 16
        %v569 = vrot.slane %v567, 1
        %v570 = vor.u32 %v565, %v569
        %v572 = vshll.u32 %v481, 16
        %v574 = vrot.slane %v572, 1
        %v575 = vsel %vm491, %v570, %v574
        %v577 = vshrl.u32 %v434, 16
        %v579 = vshll.u32 %v434, 16
        %v581 = vrot.slane %v579, 1
        %v582 = vor.u32 %v577, %v581
        %v584 = vshll.u32 %v482, 16
        %v586 = vrot.slane %v584, 1
        %v587 = vsel %vm491, %v582, %v586
        %v589 = vshrl.u32 %v435, 16
        %v591 = vshll.u32 %v435, 16
        %v593 = vrot.slane %v591, 1
        %v594 = vor.u32 %v589, %v593
        %v596 = vshll.u32 %v483, 16
        %v598 = vrot.slane %v596, 1
        %v599 = vsel %vm491, %v594, %v598
        %v601 = vshrl.u32 %v436, 16
        %v603 = vshll.u32 %v436, 16
        %v605 = vrot.slane %v603, 1
        %v606 = vor.u32 %v601, %v605
        %v608 = vshll.u32 %v484, 16
        %v610 = vrot.slane %v608, 1
        %v611 = vsel %vm491, %v606, %v610
        %v613 = vshrl.u32 %v437, 16
        %v615 = vshll.u32 %v437, 16
        %v617 = vrot.slane %v615, 1
        %v618 = vor.u32 %v613, %v617
        %v620 = vshll.u32 %v485, 16
        %v622 = vrot.slane %v620, 1
        %v623 = vsel %vm491, %v618, %v622
        %v625 = vshrl.u32 %v438, 16
        %v627 = vshll.u32 %v438, 16
        %v629 = vrot.slane %v627, 1
        %v630 = vor.u32 %v625, %v629
        %v632 = vshll.u32 %v486, 16
        %v634 = vrot.slane %v632, 1
        %v635 = vsel %vm491, %v630, %v634
        %v637 = vshrl.u32 %v439, 16
        %v639 = vshll.u32 %v439, 16
        %v641 = vrot.slane %v639, 1
        %v642 = vor.u32 %v637, %v641
        %v644 = vshll.u32 %v487, 16
        %v646 = vrot.slane %v644, 1
        %v647 = vsel %vm491, %v642, %v646
        %v649 = vshrl.u32 %v440, 16
        %v651 = vshll.u32 %v440, 16
        %v653 = vrot.slane %v651, 1
        %v654 = vor.u32 %v649, %v653
        %v656 = vshll.u32 %v488, 16
        %v658 = vrot.slane %v656, 1
        %v659 = vsel %vm491, %v654, %v658
        %v661 = vshrl.u32 %v441, 16
        %v663 = vshll.u32 %v441, 16
        %v665 = vrot.slane %v663, 1
        %v666 = vor.u32 %v661, %v665
        %v668 = vshll.u32 %v489, 16
        %v670 = vrot.slane %v668, 1
        %v671 = vsel %vm491, %v666, %v670
        %v673 = vshrl.u32 %v442, 16
        %v675 = vshll.u32 %v442, 16
        %v677 = vrot.slane %v675, 1
        %v678 = vor.u32 %v673, %v677
        %v680 = vshll.u32 %v490, 16
        %v682 = vrot.slane %v680, 1
        %v683 = vsel %vm491, %v678, %v682
        %684 = vrot.lane.b32.xlu0 %v503, 4
        %v685 = vpop.permute.xlu0 %684
        %686 = vrot.lane.b32.xlu0 %v515, 4
        %v687 = vpop.permute.xlu0 %686
        %688 = vrot.lane.b32.xlu0 %v527, 4
        %v689 = vpop.permute.xlu0 %688
        %690 = vrot.lane.b32.xlu0 %v539, 4
        %v691 = vpop.permute.xlu0 %690
        %692 = vrot.lane.b32.xlu0 %v551, 4
        %v693 = vpop.permute.xlu0 %692
        %694 = vrot.lane.b32.xlu0 %v563, 4
        %v695 = vpop.permute.xlu0 %694
        %696 = vrot.lane.b32.xlu0 %v575, 4
        %v697 = vpop.permute.xlu0 %696
        %698 = vrot.lane.b32.xlu0 %v587, 4
        %v699 = vpop.permute.xlu0 %698
        %700 = vrot.lane.b32.xlu0 %v599, 4
        %v701 = vpop.permute.xlu0 %700
        %702 = vrot.lane.b32.xlu0 %v611, 4
        %v703 = vpop.permute.xlu0 %702
        %704 = vrot.lane.b32.xlu0 %v623, 4
        %v705 = vpop.permute.xlu0 %704
        %706 = vrot.lane.b32.xlu0 %v635, 4
        %v707 = vpop.permute.xlu0 %706
        %708 = vrot.lane.b32.xlu0 %v647, 4
        %v709 = vpop.permute.xlu0 %708
        %710 = vrot.lane.b32.xlu0 %v659, 4
        %v711 = vpop.permute.xlu0 %710
        %712 = vrot.lane.b32.xlu0 %v671, 4
        %v713 = vpop.permute.xlu0 %712
        %714 = vrot.lane.b32.xlu0 %v683, 4
        %v715 = vpop.permute.xlu0 %714
        %v732 = vunpack.c.l.b16 %v217
        %v733 = vunpack.c.l.b16 %v218
        %v734 = vunpack.c.l.b16 %v219
        %v735 = vunpack.c.l.b16 %v220
        %v736 = vunpack.c.l.b16 %v221
        %v737 = vunpack.c.l.b16 %v222
        %v738 = vunpack.c.l.b16 %v223
        %v739 = vunpack.c.l.b16 %v224
        %v740 = vunpack.c.l.b16 %v225
        %v741 = vunpack.c.l.b16 %v226
        %v742 = vunpack.c.l.b16 %v227
        %v743 = vunpack.c.l.b16 %v228
        %v744 = vunpack.c.l.b16 %v229
        %v745 = vunpack.c.l.b16 %v230
        %v746 = vunpack.c.l.b16 %v231
        %v747 = vunpack.c.l.b16 %v232
        %v748 = vpack.c.b16 %v396, %v732
        %v749 = vpack.c.b16 %v398, %v733
        %v750 = vpack.c.b16 %v400, %v734
        %v751 = vpack.c.b16 %v402, %v735
        %v752 = vpack.c.b16 %v404, %v736
        %v753 = vpack.c.b16 %v406, %v737
        %v754 = vpack.c.b16 %v408, %v738
        %v755 = vpack.c.b16 %v410, %v739
        %v756 = vpack.c.b16 %v412, %v740
        %v757 = vpack.c.b16 %v414, %v741
        %v758 = vpack.c.b16 %v416, %v742
        %v759 = vpack.c.b16 %v418, %v743
        %v760 = vpack.c.b16 %v420, %v744
        %v761 = vpack.c.b16 %v422, %v745
        %v762 = vpack.c.b16 %v424, %v746
        %v763 = vpack.c.b16 %v426, %v747
        %vm764 = vcmask 1046528
        %v765 = vrot.slane %v748, 1
        %v766 = vrot.slane %v475, 1
        %v767 = vsel %vm764, %v765, %v766
        %v768 = vrot.slane %v749, 1
        %v769 = vrot.slane %v476, 1
        %v770 = vsel %vm764, %v768, %v769
        %v771 = vrot.slane %v750, 1
        %v772 = vrot.slane %v477, 1
        %v773 = vsel %vm764, %v771, %v772
        %v774 = vrot.slane %v751, 1
        %v775 = vrot.slane %v478, 1
        %v776 = vsel %vm764, %v774, %v775
        %v777 = vrot.slane %v752, 1
        %v778 = vrot.slane %v479, 1
        %v779 = vsel %vm764, %v777, %v778
        %v780 = vrot.slane %v753, 1
        %v781 = vrot.slane %v480, 1
        %v782 = vsel %vm764, %v780, %v781
        %v783 = vrot.slane %v754, 1
        %v784 = vrot.slane %v481, 1
        %v785 = vsel %vm764, %v783, %v784
        %v786 = vrot.slane %v755, 1
        %v787 = vrot.slane %v482, 1
        %v788 = vsel %vm764, %v786, %v787
        %v789 = vrot.slane %v756, 1
        %v790 = vrot.slane %v483, 1
        %v791 = vsel %vm764, %v789, %v790
        %v792 = vrot.slane %v757, 1
        %v793 = vrot.slane %v484, 1
        %v794 = vsel %vm764, %v792, %v793
        %v795 = vrot.slane %v758, 1
        %v796 = vrot.slane %v485, 1
        %v797 = vsel %vm764, %v795, %v796
        %v798 = vrot.slane %v759, 1
        %v799 = vrot.slane %v486, 1
        %v800 = vsel %vm764, %v798, %v799
        %v801 = vrot.slane %v760, 1
        %v802 = vrot.slane %v487, 1
        %v803 = vsel %vm764, %v801, %v802
        %v804 = vrot.slane %v761, 1
        %v805 = vrot.slane %v488, 1
        %v806 = vsel %vm764, %v804, %v805
        %v807 = vrot.slane %v762, 1
        %v808 = vrot.slane %v489, 1
        %v809 = vsel %vm764, %v807, %v808
        %v810 = vrot.slane %v763, 1
        %v811 = vrot.slane %v490, 1
        %v812 = vsel %vm764, %v810, %v811
        %813 = vrot.lane.b32.xlu0 %v767, 8
        %v814 = vpop.permute.xlu0 %813
        %815 = vrot.lane.b32.xlu0 %v770, 8
        %v816 = vpop.permute.xlu0 %815
        %817 = vrot.lane.b32.xlu0 %v773, 8
        %v818 = vpop.permute.xlu0 %817
        %819 = vrot.lane.b32.xlu0 %v776, 8
        %v820 = vpop.permute.xlu0 %819
        %821 = vrot.lane.b32.xlu0 %v779, 8
        %v822 = vpop.permute.xlu0 %821
        %823 = vrot.lane.b32.xlu0 %v782, 8
        %v824 = vpop.permute.xlu0 %823
        %825 = vrot.lane.b32.xlu0 %v785, 8
        %v826 = vpop.permute.xlu0 %825
        %827 = vrot.lane.b32.xlu0 %v788, 8
        %v828 = vpop.permute.xlu0 %827
        %829 = vrot.lane.b32.xlu0 %v791, 8
        %v830 = vpop.permute.xlu0 %829
        %831 = vrot.lane.b32.xlu0 %v794, 8
        %v832 = vpop.permute.xlu0 %831
        %833 = vrot.lane.b32.xlu0 %v797, 8
        %v834 = vpop.permute.xlu0 %833
        %835 = vrot.lane.b32.xlu0 %v800, 8
        %v836 = vpop.permute.xlu0 %835
        %837 = vrot.lane.b32.xlu0 %v803, 8
        %v838 = vpop.permute.xlu0 %837
        %839 = vrot.lane.b32.xlu0 %v806, 8
        %v840 = vpop.permute.xlu0 %839
        %841 = vrot.lane.b32.xlu0 %v809, 8
        %v842 = vpop.permute.xlu0 %841
        %843 = vrot.lane.b32.xlu0 %v812, 8
        %v844 = vpop.permute.xlu0 %843
        %v877 = vunpack.c.l.b16 %v234
        %v878 = vunpack.c.l.b16 %v235
        %v879 = vunpack.c.l.b16 %v236
        %v880 = vunpack.c.l.b16 %v237
        %v881 = vunpack.c.l.b16 %v238
        %v882 = vunpack.c.l.b16 %v239
        %v883 = vunpack.c.l.b16 %v240
        %v884 = vunpack.c.l.b16 %v241
        %v885 = vunpack.c.l.b16 %v242
        %v886 = vunpack.c.l.b16 %v243
        %v887 = vunpack.c.l.b16 %v244
        %v888 = vunpack.c.l.b16 %v245
        %v889 = vunpack.c.l.b16 %v246
        %v890 = vunpack.c.l.b16 %v247
        %v891 = vunpack.c.l.b16 %v248
        %v892 = vunpack.c.l.b16 %v249
        %v893 = vunpack.c.l.b16 %v250
        %v894 = vunpack.c.l.b16 %v251
        %v895 = vunpack.c.l.b16 %v252
        %v896 = vunpack.c.l.b16 %v253
        %v897 = vunpack.c.l.b16 %v254
        %v898 = vunpack.c.l.b16 %v255
        %v899 = vunpack.c.l.b16 %v256
        %v900 = vunpack.c.l.b16 %v257
        %v901 = vunpack.c.l.b16 %v258
        %v902 = vunpack.c.l.b16 %v259
        %v903 = vunpack.c.l.b16 %v260
        %v904 = vunpack.c.l.b16 %v261
        %v905 = vunpack.c.l.b16 %v262
        %v906 = vunpack.c.l.b16 %v263
        %v907 = vunpack.c.l.b16 %v264
        %v908 = vunpack.c.l.b16 %v265
        %v909 = vpack.c.b16 %v878, %v877
        %v910 = vpack.c.b16 %v880, %v879
        %v911 = vpack.c.b16 %v882, %v881
        %v912 = vpack.c.b16 %v884, %v883
        %v913 = vpack.c.b16 %v886, %v885
        %v914 = vpack.c.b16 %v888, %v887
        %v915 = vpack.c.b16 %v890, %v889
        %v916 = vpack.c.b16 %v892, %v891
        %v917 = vpack.c.b16 %v894, %v893
        %v918 = vpack.c.b16 %v896, %v895
        %v919 = vpack.c.b16 %v898, %v897
        %v920 = vpack.c.b16 %v900, %v899
        %v921 = vpack.c.b16 %v902, %v901
        %v922 = vpack.c.b16 %v904, %v903
        %v923 = vpack.c.b16 %v906, %v905
        %v924 = vpack.c.b16 %v908, %v907
        %925 = vrot.lane.b32.xlu0 %v909, 12
        %v926 = vpop.permute.xlu0 %925
        %927 = vrot.lane.b32.xlu0 %v910, 12
        %v928 = vpop.permute.xlu0 %927
        %929 = vrot.lane.b32.xlu0 %v911, 12
        %v930 = vpop.permute.xlu0 %929
        %931 = vrot.lane.b32.xlu0 %v912, 12
        %v932 = vpop.permute.xlu0 %931
        %933 = vrot.lane.b32.xlu0 %v913, 12
        %v934 = vpop.permute.xlu0 %933
        %935 = vrot.lane.b32.xlu0 %v914, 12
        %v936 = vpop.permute.xlu0 %935
        %937 = vrot.lane.b32.xlu0 %v915, 12
        %v938 = vpop.permute.xlu0 %937
        %939 = vrot.lane.b32.xlu0 %v916, 12
        %v940 = vpop.permute.xlu0 %939
        %941 = vrot.lane.b32.xlu0 %v917, 12
        %v942 = vpop.permute.xlu0 %941
        %943 = vrot.lane.b32.xlu0 %v918, 12
        %v944 = vpop.permute.xlu0 %943
        %945 = vrot.lane.b32.xlu0 %v919, 12
        %v946 = vpop.permute.xlu0 %945
        %947 = vrot.lane.b32.xlu0 %v920, 12
        %v948 = vpop.permute.xlu0 %947
        %949 = vrot.lane.b32.xlu0 %v921, 12
        %v950 = vpop.permute.xlu0 %949
        %951 = vrot.lane.b32.xlu0 %v922, 12
        %v952 = vpop.permute.xlu0 %951
        %953 = vrot.lane.b32.xlu0 %v923, 12
        %v954 = vpop.permute.xlu0 %953
        %955 = vrot.lane.b32.xlu0 %v924, 12
        %v956 = vpop.permute.xlu0 %955
        %v973 = vunpack.c.l.b16 %v266
        %v974 = vunpack.c.l.b16 %v267
        %v975 = vunpack.c.l.b16 %v268
        %v976 = vunpack.c.l.b16 %v269
        %v977 = vunpack.c.l.b16 %v270
        %v978 = vunpack.c.l.b16 %v271
        %v979 = vunpack.c.l.b16 %v272
        %v980 = vunpack.c.l.b16 %v273
        %v981 = vunpack.c.l.b16 %v274
        %v982 = vunpack.c.l.b16 %v275
        %v983 = vunpack.c.l.b16 %v276
        %v984 = vunpack.c.l.b16 %v277
        %v985 = vunpack.c.l.b16 %v278
        %v986 = vunpack.c.l.b16 %v279
        %v987 = vunpack.c.l.b16 %v280
        %v988 = vunpack.c.l.b16 %v281
        %v989 = vpack.c.b16 %v973, %v973
        %v990 = vpack.c.b16 %v974, %v974
        %v991 = vpack.c.b16 %v975, %v975
        %v992 = vpack.c.b16 %v976, %v976
        %v993 = vpack.c.b16 %v977, %v977
        %v994 = vpack.c.b16 %v978, %v978
        %v995 = vpack.c.b16 %v979, %v979
        %v996 = vpack.c.b16 %v980, %v980
        %v997 = vpack.c.b16 %v981, %v981
        %v998 = vpack.c.b16 %v982, %v982
        %v999 = vpack.c.b16 %v983, %v983
        %v1000 = vpack.c.b16 %v984, %v984
        %v1001 = vpack.c.b16 %v985, %v985
        %v1002 = vpack.c.b16 %v986, %v986
        %v1003 = vpack.c.b16 %v987, %v987
        %v1004 = vpack.c.b16 %v988, %v988
        %v1006 = vshrl.u32 %v909, 16
        %v1008 = vshll.u32 %v909, 16
        %v1010 = vrot.slane %v1008, 1
        %v1011 = vor.u32 %v1006, %v1010
        %v1013 = vshll.u32 %v989, 16
        %v1015 = vrot.slane %v1013, 1
        %v1016 = vsel %vm491, %v1011, %v1015
        %v1018 = vshrl.u32 %v910, 16
        %v1020 = vshll.u32 %v910, 16
        %v1022 = vrot.slane %v1020, 1
        %v1023 = vor.u32 %v1018, %v1022
        %v1025 = vshll.u32 %v990, 16
        %v1027 = vrot.slane %v1025, 1
        %v1028 = vsel %vm491, %v1023, %v1027
        %v1030 = vshrl.u32 %v911, 16
        %v1032 = vshll.u32 %v911, 16
        %v1034 = vrot.slane %v1032, 1
        %v1035 = vor.u32 %v1030, %v1034
        %v1037 = vshll.u32 %v991, 16
        %v1039 = vrot.slane %v1037, 1
        %v1040 = vsel %vm491, %v1035, %v1039
        %v1042 = vshrl.u32 %v912, 16
        %v1044 = vshll.u32 %v912, 16
        %v1046 = vrot.slane %v1044, 1
        %v1047 = vor.u32 %v1042, %v1046
        %v1049 = vshll.u32 %v992, 16
        %v1051 = vrot.slane %v1049, 1
        %v1052 = vsel %vm491, %v1047, %v1051
        %v1054 = vshrl.u32 %v913, 16
        %v1056 = vshll.u32 %v913, 16
        %v1058 = vrot.slane %v1056, 1
        %v1059 = vor.u32 %v1054, %v1058
        %v1061 = vshll.u32 %v993, 16
        %v1063 = vrot.slane %v1061, 1
        %v1064 = vsel %vm491, %v1059, %v1063
        %v1066 = vshrl.u32 %v914, 16
        %v1068 = vshll.u32 %v914, 16
        %v1070 = vrot.slane %v1068, 1
        %v1071 = vor.u32 %v1066, %v1070
        %v1073 = vshll.u32 %v994, 16
        %v1075 = vrot.slane %v1073, 1
        %v1076 = vsel %vm491, %v1071, %v1075
        %v1078 = vshrl.u32 %v915, 16
        %v1080 = vshll.u32 %v915, 16
        %v1082 = vrot.slane %v1080, 1
        %v1083 = vor.u32 %v1078, %v1082
        %v1085 = vshll.u32 %v995, 16
        %v1087 = vrot.slane %v1085, 1
        %v1088 = vsel %vm491, %v1083, %v1087
        %v1090 = vshrl.u32 %v916, 16
        %v1092 = vshll.u32 %v916, 16
        %v1094 = vrot.slane %v1092, 1
        %v1095 = vor.u32 %v1090, %v1094
        %v1097 = vshll.u32 %v996, 16
        %v1099 = vrot.slane %v1097, 1
        %v1100 = vsel %vm491, %v1095, %v1099
        %v1102 = vshrl.u32 %v917, 16
        %v1104 = vshll.u32 %v917, 16
        %v1106 = vrot.slane %v1104, 1
        %v1107 = vor.u32 %v1102, %v1106
        %v1109 = vshll.u32 %v997, 16
        %v1111 = vrot.slane %v1109, 1
        %v1112 = vsel %vm491, %v1107, %v1111
        %v1114 = vshrl.u32 %v918, 16
        %v1116 = vshll.u32 %v918, 16
        %v1118 = vrot.slane %v1116, 1
        %v1119 = vor.u32 %v1114, %v1118
        %v1121 = vshll.u32 %v998, 16
        %v1123 = vrot.slane %v1121, 1
        %v1124 = vsel %vm491, %v1119, %v1123
        %v1126 = vshrl.u32 %v919, 16
        %v1128 = vshll.u32 %v919, 16
        %v1130 = vrot.slane %v1128, 1
        %v1131 = vor.u32 %v1126, %v1130
        %v1133 = vshll.u32 %v999, 16
        %v1135 = vrot.slane %v1133, 1
        %v1136 = vsel %vm491, %v1131, %v1135
        %v1138 = vshrl.u32 %v920, 16
        %v1140 = vshll.u32 %v920, 16
        %v1142 = vrot.slane %v1140, 1
        %v1143 = vor.u32 %v1138, %v1142
        %v1145 = vshll.u32 %v1000, 16
        %v1147 = vrot.slane %v1145, 1
        %v1148 = vsel %vm491, %v1143, %v1147
        %v1150 = vshrl.u32 %v921, 16
        %v1152 = vshll.u32 %v921, 16
        %v1154 = vrot.slane %v1152, 1
        %v1155 = vor.u32 %v1150, %v1154
        %v1157 = vshll.u32 %v1001, 16
        %v1159 = vrot.slane %v1157, 1
        %v1160 = vsel %vm491, %v1155, %v1159
        %v1162 = vshrl.u32 %v922, 16
        %v1164 = vshll.u32 %v922, 16
        %v1166 = vrot.slane %v1164, 1
        %v1167 = vor.u32 %v1162, %v1166
        %v1169 = vshll.u32 %v1002, 16
        %v1171 = vrot.slane %v1169, 1
        %v1172 = vsel %vm491, %v1167, %v1171
        %v1174 = vshrl.u32 %v923, 16
        %v1176 = vshll.u32 %v923, 16
        %v1178 = vrot.slane %v1176, 1
        %v1179 = vor.u32 %v1174, %v1178
        %v1181 = vshll.u32 %v1003, 16
        %v1183 = vrot.slane %v1181, 1
        %v1184 = vsel %vm491, %v1179, %v1183
        %v1186 = vshrl.u32 %v924, 16
        %v1188 = vshll.u32 %v924, 16
        %v1190 = vrot.slane %v1188, 1
        %v1191 = vor.u32 %v1186, %v1190
        %v1193 = vshll.u32 %v1004, 16
        %v1195 = vrot.slane %v1193, 1
        %v1196 = vsel %vm491, %v1191, %v1195
        %1197 = vrot.lane.b32.xlu0 %v1016, 16
        %v1198 = vpop.permute.xlu0 %1197
        %1199 = vrot.lane.b32.xlu0 %v1028, 16
        %v1200 = vpop.permute.xlu0 %1199
        %1201 = vrot.lane.b32.xlu0 %v1040, 16
        %v1202 = vpop.permute.xlu0 %1201
        %1203 = vrot.lane.b32.xlu0 %v1052, 16
        %v1204 = vpop.permute.xlu0 %1203
        %1205 = vrot.lane.b32.xlu0 %v1064, 16
        %v1206 = vpop.permute.xlu0 %1205
        %1207 = vrot.lane.b32.xlu0 %v1076, 16
        %v1208 = vpop.permute.xlu0 %1207
        %1209 = vrot.lane.b32.xlu0 %v1088, 16
        %v1210 = vpop.permute.xlu0 %1209
        %1211 = vrot.lane.b32.xlu0 %v1100, 16
        %v1212 = vpop.permute.xlu0 %1211
        %1213 = vrot.lane.b32.xlu0 %v1112, 16
        %v1214 = vpop.permute.xlu0 %1213
        %1215 = vrot.lane.b32.xlu0 %v1124, 16
        %v1216 = vpop.permute.xlu0 %1215
        %1217 = vrot.lane.b32.xlu0 %v1136, 16
        %v1218 = vpop.permute.xlu0 %1217
        %1219 = vrot.lane.b32.xlu0 %v1148, 16
        %v1220 = vpop.permute.xlu0 %1219
        %1221 = vrot.lane.b32.xlu0 %v1160, 16
        %v1222 = vpop.permute.xlu0 %1221
        %1223 = vrot.lane.b32.xlu0 %v1172, 16
        %v1224 = vpop.permute.xlu0 %1223
        %1225 = vrot.lane.b32.xlu0 %v1184, 16
        %v1226 = vpop.permute.xlu0 %1225
        %1227 = vrot.lane.b32.xlu0 %v1196, 16
        %v1228 = vpop.permute.xlu0 %1227
        %v1245 = vunpack.c.l.b16 %v282
        %v1246 = vunpack.c.l.b16 %v283
        %v1247 = vunpack.c.l.b16 %v284
        %v1248 = vunpack.c.l.b16 %v285
        %v1249 = vunpack.c.l.b16 %v286
        %v1250 = vunpack.c.l.b16 %v287
        %v1251 = vunpack.c.l.b16 %v288
        %v1252 = vunpack.c.l.b16 %v289
        %v1253 = vunpack.c.l.b16 %v290
        %v1254 = vunpack.c.l.b16 %v291
        %v1255 = vunpack.c.l.b16 %v292
        %v1256 = vunpack.c.l.b16 %v293
        %v1257 = vunpack.c.l.b16 %v294
        %v1258 = vunpack.c.l.b16 %v295
        %v1259 = vunpack.c.l.b16 %v296
        %v1260 = vunpack.c.l.b16 %v297
        %v1261 = vpack.c.b16 %v878, %v1245
        %v1262 = vpack.c.b16 %v880, %v1246
        %v1263 = vpack.c.b16 %v882, %v1247
        %v1264 = vpack.c.b16 %v884, %v1248
        %v1265 = vpack.c.b16 %v886, %v1249
        %v1266 = vpack.c.b16 %v888, %v1250
        %v1267 = vpack.c.b16 %v890, %v1251
        %v1268 = vpack.c.b16 %v892, %v1252
        %v1269 = vpack.c.b16 %v894, %v1253
        %v1270 = vpack.c.b16 %v896, %v1254
        %v1271 = vpack.c.b16 %v898, %v1255
        %v1272 = vpack.c.b16 %v900, %v1256
        %v1273 = vpack.c.b16 %v902, %v1257
        %v1274 = vpack.c.b16 %v904, %v1258
        %v1275 = vpack.c.b16 %v906, %v1259
        %v1276 = vpack.c.b16 %v908, %v1260
        %v1277 = vrot.slane %v1261, 1
        %v1278 = vrot.slane %v989, 1
        %v1279 = vsel %vm764, %v1277, %v1278
        %v1280 = vrot.slane %v1262, 1
        %v1281 = vrot.slane %v990, 1
        %v1282 = vsel %vm764, %v1280, %v1281
        %v1283 = vrot.slane %v1263, 1
        %v1284 = vrot.slane %v991, 1
        %v1285 = vsel %vm764, %v1283, %v1284
        %v1286 = vrot.slane %v1264, 1
        %v1287 = vrot.slane %v992, 1
        %v1288 = vsel %vm764, %v1286, %v1287
        %v1289 = vrot.slane %v1265, 1
        %v1290 = vrot.slane %v993, 1
        %v1291 = vsel %vm764, %v1289, %v1290
        %v1292 = vrot.slane %v1266, 1
        %v1293 = vrot.slane %v994, 1
        %v1294 = vsel %vm764, %v1292, %v1293
        %v1295 = vrot.slane %v1267, 1
        %v1296 = vrot.slane %v995, 1
        %v1297 = vsel %vm764, %v1295, %v1296
        %v1298 = vrot.slane %v1268, 1
        %v1299 = vrot.slane %v996, 1
        %v1300 = vsel %vm764, %v1298, %v1299
        %v1301 = vrot.slane %v1269, 1
        %v1302 = vrot.slane %v997, 1
        %v1303 = vsel %vm764, %v1301, %v1302
        %v1304 = vrot.slane %v1270, 1
        %v1305 = vrot.slane %v998, 1
        %v1306 = vsel %vm764, %v1304, %v1305
        %v1307 = vrot.slane %v1271, 1
        %v1308 = vrot.slane %v999, 1
        %v1309 = vsel %vm764, %v1307, %v1308
        %v1310 = vrot.slane %v1272, 1
        %v1311 = vrot.slane %v1000, 1
        %v1312 = vsel %vm764, %v1310, %v1311
        %v1313 = vrot.slane %v1273, 1
        %v1314 = vrot.slane %v1001, 1
        %v1315 = vsel %vm764, %v1313, %v1314
        %v1316 = vrot.slane %v1274, 1
        %v1317 = vrot.slane %v1002, 1
        %v1318 = vsel %vm764, %v1316, %v1317
        %v1319 = vrot.slane %v1275, 1
        %v1320 = vrot.slane %v1003, 1
        %v1321 = vsel %vm764, %v1319, %v1320
        %v1322 = vrot.slane %v1276, 1
        %v1323 = vrot.slane %v1004, 1
        %v1324 = vsel %vm764, %v1322, %v1323
        %1325 = vrot.lane.b32.xlu0 %v1279, 20
        %v1326 = vpop.permute.xlu0 %1325
        %1327 = vrot.lane.b32.xlu0 %v1282, 20
        %v1328 = vpop.permute.xlu0 %1327
        %1329 = vrot.lane.b32.xlu0 %v1285, 20
        %v1330 = vpop.permute.xlu0 %1329
        %1331 = vrot.lane.b32.xlu0 %v1288, 20
        %v1332 = vpop.permute.xlu0 %1331
        %1333 = vrot.lane.b32.xlu0 %v1291, 20
        %v1334 = vpop.permute.xlu0 %1333
        %1335 = vrot.lane.b32.xlu0 %v1294, 20
        %v1336 = vpop.permute.xlu0 %1335
        %1337 = vrot.lane.b32.xlu0 %v1297, 20
        %v1338 = vpop.permute.xlu0 %1337
        %1339 = vrot.lane.b32.xlu0 %v1300, 20
        %v1340 = vpop.permute.xlu0 %1339
        %1341 = vrot.lane.b32.xlu0 %v1303, 20
        %v1342 = vpop.permute.xlu0 %1341
        %1343 = vrot.lane.b32.xlu0 %v1306, 20
        %v1344 = vpop.permute.xlu0 %1343
        %1345 = vrot.lane.b32.xlu0 %v1309, 20
        %v1346 = vpop.permute.xlu0 %1345
        %1347 = vrot.lane.b32.xlu0 %v1312, 20
        %v1348 = vpop.permute.xlu0 %1347
        %1349 = vrot.lane.b32.xlu0 %v1315, 20
        %v1350 = vpop.permute.xlu0 %1349
        %1351 = vrot.lane.b32.xlu0 %v1318, 20
        %v1352 = vpop.permute.xlu0 %1351
        %1353 = vrot.lane.b32.xlu0 %v1321, 20
        %v1354 = vpop.permute.xlu0 %1353
        %1355 = vrot.lane.b32.xlu0 %v1324, 20
        %v1356 = vpop.permute.xlu0 %1355
        %v1389 = vunpack.c.l.b16 %v299
        %v1390 = vunpack.c.l.b16 %v300
        %v1391 = vunpack.c.l.b16 %v301
        %v1392 = vunpack.c.l.b16 %v302
        %v1393 = vunpack.c.l.b16 %v303
        %v1394 = vunpack.c.l.b16 %v304
        %v1395 = vunpack.c.l.b16 %v305
        %v1396 = vunpack.c.l.b16 %v306
        %v1397 = vunpack.c.l.b16 %v307
        %v1398 = vunpack.c.l.b16 %v308
        %v1399 = vunpack.c.l.b16 %v309
        %v1400 = vunpack.c.l.b16 %v310
        %v1401 = vunpack.c.l.b16 %v311
        %v1402 = vunpack.c.l.b16 %v312
        %v1403 = vunpack.c.l.b16 %v313
        %v1404 = vunpack.c.l.b16 %v314
        %v1405 = vunpack.c.l.b16 %v315
        %v1406 = vunpack.c.l.b16 %v316
        %v1407 = vunpack.c.l.b16 %v317
        %v1408 = vunpack.c.l.b16 %v318
        %v1409 = vunpack.c.l.b16 %v319
        %v1410 = vunpack.c.l.b16 %v320
        %v1411 = vunpack.c.l.b16 %v321
        %v1412 = vunpack.c.l.b16 %v322
        %v1413 = vunpack.c.l.b16 %v323
        %v1414 = vunpack.c.l.b16 %v324
        %v1415 = vunpack.c.l.b16 %v325
        %v1416 = vunpack.c.l.b16 %v326
        %v1417 = vunpack.c.l.b16 %v327
        %v1418 = vunpack.c.l.b16 %v328
        %v1419 = vunpack.c.l.b16 %v329
        %v1420 = vunpack.c.l.b16 %v330
        %v1421 = vpack.c.b16 %v1390, %v1389
        %v1422 = vpack.c.b16 %v1392, %v1391
        %v1423 = vpack.c.b16 %v1394, %v1393
        %v1424 = vpack.c.b16 %v1396, %v1395
        %v1425 = vpack.c.b16 %v1398, %v1397
        %v1426 = vpack.c.b16 %v1400, %v1399
        %v1427 = vpack.c.b16 %v1402, %v1401
        %v1428 = vpack.c.b16 %v1404, %v1403
        %v1429 = vpack.c.b16 %v1406, %v1405
        %v1430 = vpack.c.b16 %v1408, %v1407
        %v1431 = vpack.c.b16 %v1410, %v1409
        %v1432 = vpack.c.b16 %v1412, %v1411
        %v1433 = vpack.c.b16 %v1414, %v1413
        %v1434 = vpack.c.b16 %v1416, %v1415
        %v1435 = vpack.c.b16 %v1418, %v1417
        %v1436 = vpack.c.b16 %v1420, %v1419
        %1437 = vrot.lane.b32.xlu0 %v1421, 24
        %v1438 = vpop.permute.xlu0 %1437
        %1439 = vrot.lane.b32.xlu0 %v1422, 24
        %v1440 = vpop.permute.xlu0 %1439
        %1441 = vrot.lane.b32.xlu0 %v1423, 24
        %v1442 = vpop.permute.xlu0 %1441
        %1443 = vrot.lane.b32.xlu0 %v1424, 24
        %v1444 = vpop.permute.xlu0 %1443
        %1445 = vrot.lane.b32.xlu0 %v1425, 24
        %v1446 = vpop.permute.xlu0 %1445
        %1447 = vrot.lane.b32.xlu0 %v1426, 24
        %v1448 = vpop.permute.xlu0 %1447
        %1449 = vrot.lane.b32.xlu0 %v1427, 24
        %v1450 = vpop.permute.xlu0 %1449
        %1451 = vrot.lane.b32.xlu0 %v1428, 24
        %v1452 = vpop.permute.xlu0 %1451
        %1453 = vrot.lane.b32.xlu0 %v1429, 24
        %v1454 = vpop.permute.xlu0 %1453
        %1455 = vrot.lane.b32.xlu0 %v1430, 24
        %v1456 = vpop.permute.xlu0 %1455
        %1457 = vrot.lane.b32.xlu0 %v1431, 24
        %v1458 = vpop.permute.xlu0 %1457
        %1459 = vrot.lane.b32.xlu0 %v1432, 24
        %v1460 = vpop.permute.xlu0 %1459
        %1461 = vrot.lane.b32.xlu0 %v1433, 24
        %v1462 = vpop.permute.xlu0 %1461
        %1463 = vrot.lane.b32.xlu0 %v1434, 24
        %v1464 = vpop.permute.xlu0 %1463
        %1465 = vrot.lane.b32.xlu0 %v1435, 24
        %v1466 = vpop.permute.xlu0 %1465
        %1467 = vrot.lane.b32.xlu0 %v1436, 24
        %v1468 = vpop.permute.xlu0 %1467
        %v1485 = vunpack.c.l.b16 %v331
        %v1486 = vunpack.c.l.b16 %v332
        %v1487 = vunpack.c.l.b16 %v333
        %v1488 = vunpack.c.l.b16 %v334
        %v1489 = vunpack.c.l.b16 %v335
        %v1490 = vunpack.c.l.b16 %v336
        %v1491 = vunpack.c.l.b16 %v337
        %v1492 = vunpack.c.l.b16 %v338
        %v1493 = vunpack.c.l.b16 %v339
        %v1494 = vunpack.c.l.b16 %v340
        %v1495 = vunpack.c.l.b16 %v341
        %v1496 = vunpack.c.l.b16 %v342
        %v1497 = vunpack.c.l.b16 %v343
        %v1498 = vunpack.c.l.b16 %v344
        %v1499 = vunpack.c.l.b16 %v345
        %v1500 = vunpack.c.l.b16 %v346
        %v1501 = vpack.c.b16 %v1485, %v1485
        %v1502 = vpack.c.b16 %v1486, %v1486
        %v1503 = vpack.c.b16 %v1487, %v1487
        %v1504 = vpack.c.b16 %v1488, %v1488
        %v1505 = vpack.c.b16 %v1489, %v1489
        %v1506 = vpack.c.b16 %v1490, %v1490
        %v1507 = vpack.c.b16 %v1491, %v1491
        %v1508 = vpack.c.b16 %v1492, %v1492
        %v1509 = vpack.c.b16 %v1493, %v1493
        %v1510 = vpack.c.b16 %v1494, %v1494
        %v1511 = vpack.c.b16 %v1495, %v1495
        %v1512 = vpack.c.b16 %v1496, %v1496
        %v1513 = vpack.c.b16 %v1497, %v1497
        %v1514 = vpack.c.b16 %v1498, %v1498
        %v1515 = vpack.c.b16 %v1499, %v1499
        %v1516 = vpack.c.b16 %v1500, %v1500
        %v1518 = vshrl.u32 %v1421, 16
        %v1520 = vshll.u32 %v1421, 16
        %v1522 = vrot.slane %v1520, 1
        %v1523 = vor.u32 %v1518, %v1522
        %v1525 = vshll.u32 %v1501, 16
        %v1527 = vrot.slane %v1525, 1
        %v1528 = vsel %vm491, %v1523, %v1527
        %v1530 = vshrl.u32 %v1422, 16
        %v1532 = vshll.u32 %v1422, 16
        %v1534 = vrot.slane %v1532, 1
        %v1535 = vor.u32 %v1530, %v1534
        %v1537 = vshll.u32 %v1502, 16
        %v1539 = vrot.slane %v1537, 1
        %v1540 = vsel %vm491, %v1535, %v1539
        %v1542 = vshrl.u32 %v1423, 16
        %v1544 = vshll.u32 %v1423, 16
        %v1546 = vrot.slane %v1544, 1
        %v1547 = vor.u32 %v1542, %v1546
        %v1549 = vshll.u32 %v1503, 16
        %v1551 = vrot.slane %v1549, 1
        %v1552 = vsel %vm491, %v1547, %v1551
        %v1554 = vshrl.u32 %v1424, 16
        %v1556 = vshll.u32 %v1424, 16
        %v1558 = vrot.slane %v1556, 1
        %v1559 = vor.u32 %v1554, %v1558
        %v1561 = vshll.u32 %v1504, 16
        %v1563 = vrot.slane %v1561, 1
        %v1564 = vsel %vm491, %v1559, %v1563
        %v1566 = vshrl.u32 %v1425, 16
        %v1568 = vshll.u32 %v1425, 16
        %v1570 = vrot.slane %v1568, 1
        %v1571 = vor.u32 %v1566, %v1570
        %v1573 = vshll.u32 %v1505, 16
        %v1575 = vrot.slane %v1573, 1
        %v1576 = vsel %vm491, %v1571, %v1575
        %v1578 = vshrl.u32 %v1426, 16
        %v1580 = vshll.u32 %v1426, 16
        %v1582 = vrot.slane %v1580, 1
        %v1583 = vor.u32 %v1578, %v1582
        %v1585 = vshll.u32 %v1506, 16
        %v1587 = vrot.slane %v1585, 1
        %v1588 = vsel %vm491, %v1583, %v1587
        %v1590 = vshrl.u32 %v1427, 16
        %v1592 = vshll.u32 %v1427, 16
        %v1594 = vrot.slane %v1592, 1
        %v1595 = vor.u32 %v1590, %v1594
        %v1597 = vshll.u32 %v1507, 16
        %v1599 = vrot.slane %v1597, 1
        %v1600 = vsel %vm491, %v1595, %v1599
        %v1602 = vshrl.u32 %v1428, 16
        %v1604 = vshll.u32 %v1428, 16
        %v1606 = vrot.slane %v1604, 1
        %v1607 = vor.u32 %v1602, %v1606
        %v1609 = vshll.u32 %v1508, 16
        %v1611 = vrot.slane %v1609, 1
        %v1612 = vsel %vm491, %v1607, %v1611
        %v1614 = vshrl.u32 %v1429, 16
        %v1616 = vshll.u32 %v1429, 16
        %v1618 = vrot.slane %v1616, 1
        %v1619 = vor.u32 %v1614, %v1618
        %v1621 = vshll.u32 %v1509, 16
        %v1623 = vrot.slane %v1621, 1
        %v1624 = vsel %vm491, %v1619, %v1623
        %v1626 = vshrl.u32 %v1430, 16
        %v1628 = vshll.u32 %v1430, 16
        %v1630 = vrot.slane %v1628, 1
        %v1631 = vor.u32 %v1626, %v1630
        %v1633 = vshll.u32 %v1510, 16
        %v1635 = vrot.slane %v1633, 1
        %v1636 = vsel %vm491, %v1631, %v1635
        %v1638 = vshrl.u32 %v1431, 16
        %v1640 = vshll.u32 %v1431, 16
        %v1642 = vrot.slane %v1640, 1
        %v1643 = vor.u32 %v1638, %v1642
        %v1645 = vshll.u32 %v1511, 16
        %v1647 = vrot.slane %v1645, 1
        %v1648 = vsel %vm491, %v1643, %v1647
        %v1650 = vshrl.u32 %v1432, 16
        %v1652 = vshll.u32 %v1432, 16
        %v1654 = vrot.slane %v1652, 1
        %v1655 = vor.u32 %v1650, %v1654
        %v1657 = vshll.u32 %v1512, 16
        %v1659 = vrot.slane %v1657, 1
        %v1660 = vsel %vm491, %v1655, %v1659
        %v1662 = vshrl.u32 %v1433, 16
        %v1664 = vshll.u32 %v1433, 16
        %v1666 = vrot.slane %v1664, 1
        %v1667 = vor.u32 %v1662, %v1666
        %v1669 = vshll.u32 %v1513, 16
        %v1671 = vrot.slane %v1669, 1
        %v1672 = vsel %vm491, %v1667, %v1671
        %v1674 = vshrl.u32 %v1434, 16
        %v1676 = vshll.u32 %v1434, 16
        %v1678 = vrot.slane %v1676, 1
        %v1679 = vor.u32 %v1674, %v1678
        %v1681 = vshll.u32 %v1514, 16
        %v1683 = vrot.slane %v1681, 1
        %v1684 = vsel %vm491, %v1679, %v1683
        %v1686 = vshrl.u32 %v1435, 16
        %v1688 = vshll.u32 %v1435, 16
        %v1690 = vrot.slane %v1688, 1
        %v1691 = vor.u32 %v1686, %v1690
        %v1693 = vshll.u32 %v1515, 16
        %v1695 = vrot.slane %v1693, 1
        %v1696 = vsel %vm491, %v1691, %v1695
        %v1698 = vshrl.u32 %v1436, 16
        %v1700 = vshll.u32 %v1436, 16
        %v1702 = vrot.slane %v1700, 1
        %v1703 = vor.u32 %v1698, %v1702
        %v1705 = vshll.u32 %v1516, 16
        %v1707 = vrot.slane %v1705, 1
        %v1708 = vsel %vm491, %v1703, %v1707
        %1709 = vrot.lane.b32.xlu0 %v1528, 28
        %v1710 = vpop.permute.xlu0 %1709
        %1711 = vrot.lane.b32.xlu0 %v1540, 28
        %v1712 = vpop.permute.xlu0 %1711
        %1713 = vrot.lane.b32.xlu0 %v1552, 28
        %v1714 = vpop.permute.xlu0 %1713
        %1715 = vrot.lane.b32.xlu0 %v1564, 28
        %v1716 = vpop.permute.xlu0 %1715
        %1717 = vrot.lane.b32.xlu0 %v1576, 28
        %v1718 = vpop.permute.xlu0 %1717
        %1719 = vrot.lane.b32.xlu0 %v1588, 28
        %v1720 = vpop.permute.xlu0 %1719
        %1721 = vrot.lane.b32.xlu0 %v1600, 28
        %v1722 = vpop.permute.xlu0 %1721
        %1723 = vrot.lane.b32.xlu0 %v1612, 28
        %v1724 = vpop.permute.xlu0 %1723
        %1725 = vrot.lane.b32.xlu0 %v1624, 28
        %v1726 = vpop.permute.xlu0 %1725
        %1727 = vrot.lane.b32.xlu0 %v1636, 28
        %v1728 = vpop.permute.xlu0 %1727
        %1729 = vrot.lane.b32.xlu0 %v1648, 28
        %v1730 = vpop.permute.xlu0 %1729
        %1731 = vrot.lane.b32.xlu0 %v1660, 28
        %v1732 = vpop.permute.xlu0 %1731
        %1733 = vrot.lane.b32.xlu0 %v1672, 28
        %v1734 = vpop.permute.xlu0 %1733
        %1735 = vrot.lane.b32.xlu0 %v1684, 28
        %v1736 = vpop.permute.xlu0 %1735
        %1737 = vrot.lane.b32.xlu0 %v1696, 28
        %v1738 = vpop.permute.xlu0 %1737
        %1739 = vrot.lane.b32.xlu0 %v1708, 28
        %v1740 = vpop.permute.xlu0 %1739
        %v1757 = vunpack.c.l.b16 %v347
        %v1758 = vunpack.c.l.b16 %v348
        %v1759 = vunpack.c.l.b16 %v349
        %v1760 = vunpack.c.l.b16 %v350
        %v1761 = vunpack.c.l.b16 %v351
        %v1762 = vunpack.c.l.b16 %v352
        %v1763 = vunpack.c.l.b16 %v353
        %v1764 = vunpack.c.l.b16 %v354
        %v1765 = vunpack.c.l.b16 %v355
        %v1766 = vunpack.c.l.b16 %v356
        %v1767 = vunpack.c.l.b16 %v357
        %v1768 = vunpack.c.l.b16 %v358
        %v1769 = vunpack.c.l.b16 %v359
        %v1770 = vunpack.c.l.b16 %v360
        %v1771 = vunpack.c.l.b16 %v361
        %v1772 = vunpack.c.l.b16 %v362
        %v1773 = vpack.c.b16 %v1390, %v1757
        %v1774 = vpack.c.b16 %v1392, %v1758
        %v1775 = vpack.c.b16 %v1394, %v1759
        %v1776 = vpack.c.b16 %v1396, %v1760
        %v1777 = vpack.c.b16 %v1398, %v1761
        %v1778 = vpack.c.b16 %v1400, %v1762
        %v1779 = vpack.c.b16 %v1402, %v1763
        %v1780 = vpack.c.b16 %v1404, %v1764
        %v1781 = vpack.c.b16 %v1406, %v1765
        %v1782 = vpack.c.b16 %v1408, %v1766
        %v1783 = vpack.c.b16 %v1410, %v1767
        %v1784 = vpack.c.b16 %v1412, %v1768
        %v1785 = vpack.c.b16 %v1414, %v1769
        %v1786 = vpack.c.b16 %v1416, %v1770
        %v1787 = vpack.c.b16 %v1418, %v1771
        %v1788 = vpack.c.b16 %v1420, %v1772
        %v1789 = vrot.slane %v1773, 1
        %v1790 = vrot.slane %v1501, 1
        %v1791 = vsel %vm764, %v1789, %v1790
        %v1792 = vrot.slane %v1774, 1
        %v1793 = vrot.slane %v1502, 1
        %v1794 = vsel %vm764, %v1792, %v1793
        %v1795 = vrot.slane %v1775, 1
        %v1796 = vrot.slane %v1503, 1
        %v1797 = vsel %vm764, %v1795, %v1796
        %v1798 = vrot.slane %v1776, 1
        %v1799 = vrot.slane %v1504, 1
        %v1800 = vsel %vm764, %v1798, %v1799
        %v1801 = vrot.slane %v1777, 1
        %v1802 = vrot.slane %v1505, 1
        %v1803 = vsel %vm764, %v1801, %v1802
        %v1804 = vrot.slane %v1778, 1
        %v1805 = vrot.slane %v1506, 1
        %v1806 = vsel %vm764, %v1804, %v1805
        %v1807 = vrot.slane %v1779, 1
        %v1808 = vrot.slane %v1507, 1
        %v1809 = vsel %vm764, %v1807, %v1808
        %v1810 = vrot.slane %v1780, 1
        %v1811 = vrot.slane %v1508, 1
        %v1812 = vsel %vm764, %v1810, %v1811
        %v1813 = vrot.slane %v1781, 1
        %v1814 = vrot.slane %v1509, 1
        %v1815 = vsel %vm764, %v1813, %v1814
        %v1816 = vrot.slane %v1782, 1
        %v1817 = vrot.slane %v1510, 1
        %v1818 = vsel %vm764, %v1816, %v1817
        %v1819 = vrot.slane %v1783, 1
        %v1820 = vrot.slane %v1511, 1
        %v1821 = vsel %vm764, %v1819, %v1820
        %v1822 = vrot.slane %v1784, 1
        %v1823 = vrot.slane %v1512, 1
        %v1824 = vsel %vm764, %v1822, %v1823
        %v1825 = vrot.slane %v1785, 1
        %v1826 = vrot.slane %v1513, 1
        %v1827 = vsel %vm764, %v1825, %v1826
        %v1828 = vrot.slane %v1786, 1
        %v1829 = vrot.slane %v1514, 1
        %v1830 = vsel %vm764, %v1828, %v1829
        %v1831 = vrot.slane %v1787, 1
        %v1832 = vrot.slane %v1515, 1
        %v1833 = vsel %vm764, %v1831, %v1832
        %v1834 = vrot.slane %v1788, 1
        %v1835 = vrot.slane %v1516, 1
        %v1836 = vsel %vm764, %v1834, %v1835
        %1837 = vrot.lane.b32.xlu0 %v1791, 32
        %v1838 = vpop.permute.xlu0 %1837
        %1839 = vrot.lane.b32.xlu0 %v1794, 32
        %v1840 = vpop.permute.xlu0 %1839
        %1841 = vrot.lane.b32.xlu0 %v1797, 32
        %v1842 = vpop.permute.xlu0 %1841
        %1843 = vrot.lane.b32.xlu0 %v1800, 32
        %v1844 = vpop.permute.xlu0 %1843
        %1845 = vrot.lane.b32.xlu0 %v1803, 32
        %v1846 = vpop.permute.xlu0 %1845
        %1847 = vrot.lane.b32.xlu0 %v1806, 32
        %v1848 = vpop.permute.xlu0 %1847
        %1849 = vrot.lane.b32.xlu0 %v1809, 32
        %v1850 = vpop.permute.xlu0 %1849
        %1851 = vrot.lane.b32.xlu0 %v1812, 32
        %v1852 = vpop.permute.xlu0 %1851
        %1853 = vrot.lane.b32.xlu0 %v1815, 32
        %v1854 = vpop.permute.xlu0 %1853
        %1855 = vrot.lane.b32.xlu0 %v1818, 32
        %v1856 = vpop.permute.xlu0 %1855
        %1857 = vrot.lane.b32.xlu0 %v1821, 32
        %v1858 = vpop.permute.xlu0 %1857
        %1859 = vrot.lane.b32.xlu0 %v1824, 32
        %v1860 = vpop.permute.xlu0 %1859
        %1861 = vrot.lane.b32.xlu0 %v1827, 32
        %v1862 = vpop.permute.xlu0 %1861
        %1863 = vrot.lane.b32.xlu0 %v1830, 32
        %v1864 = vpop.permute.xlu0 %1863
        %1865 = vrot.lane.b32.xlu0 %v1833, 32
        %v1866 = vpop.permute.xlu0 %1865
        %1867 = vrot.lane.b32.xlu0 %v1836, 32
        %v1868 = vpop.permute.xlu0 %1867
        %vm1869 = vcmask 31744
        %v1871 = vsel %vm1869, %v427, %v685
        %v1873 = vsel %vm1869, %v428, %v687
        %v1875 = vsel %vm1869, %v429, %v689
        %v1877 = vsel %vm1869, %v430, %v691
        %v1879 = vsel %vm1869, %v431, %v693
        %v1881 = vsel %vm1869, %v432, %v695
        %v1883 = vsel %vm1869, %v433, %v697
        %v1885 = vsel %vm1869, %v434, %v699
        %v1887 = vsel %vm1869, %v435, %v701
        %v1889 = vsel %vm1869, %v436, %v703
        %v1891 = vsel %vm1869, %v437, %v705
        %v1893 = vsel %vm1869, %v438, %v707
        %v1895 = vsel %vm1869, %v439, %v709
        %v1897 = vsel %vm1869, %v440, %v711
        %v1899 = vsel %vm1869, %v441, %v713
        %v1901 = vsel %vm1869, %v442, %v715
        %vm1902 = vcmask 64512
        %v1904 = vsel %vm1902, %v1871, %v814
        %v1906 = vsel %vm1902, %v1873, %v816
        %v1908 = vsel %vm1902, %v1875, %v818
        %v1910 = vsel %vm1902, %v1877, %v820
        %v1912 = vsel %vm1902, %v1879, %v822
        %v1914 = vsel %vm1902, %v1881, %v824
        %v1916 = vsel %vm1902, %v1883, %v826
        %v1918 = vsel %vm1902, %v1885, %v828
        %v1920 = vsel %vm1902, %v1887, %v830
        %v1922 = vsel %vm1902, %v1889, %v832
        %v1924 = vsel %vm1902, %v1891, %v834
        %v1926 = vsel %vm1902, %v1893, %v836
        %v1928 = vsel %vm1902, %v1895, %v838
        %v1930 = vsel %vm1902, %v1897, %v840
        %v1932 = vsel %vm1902, %v1899, %v842
        %v1934 = vsel %vm1902, %v1901, %v844
        %vm1935 = vcmask 97280
        %v1937 = vsel %vm1935, %v1904, %v926
        %v1939 = vsel %vm1935, %v1906, %v928
        %v1941 = vsel %vm1935, %v1908, %v930
        %v1943 = vsel %vm1935, %v1910, %v932
        %v1945 = vsel %vm1935, %v1912, %v934
        %v1947 = vsel %vm1935, %v1914, %v936
        %v1949 = vsel %vm1935, %v1916, %v938
        %v1951 = vsel %vm1935, %v1918, %v940
        %v1953 = vsel %vm1935, %v1920, %v942
        %v1955 = vsel %vm1935, %v1922, %v944
        %v1957 = vsel %vm1935, %v1924, %v946
        %v1959 = vsel %vm1935, %v1926, %v948
        %v1961 = vsel %vm1935, %v1928, %v950
        %v1963 = vsel %vm1935, %v1930, %v952
        %v1965 = vsel %vm1935, %v1932, %v954
        %v1967 = vsel %vm1935, %v1934, %v956
        %vm1968 = vcmask 130048
        %v1970 = vsel %vm1968, %v1937, %v1198
        %v1972 = vsel %vm1968, %v1939, %v1200
        %v1974 = vsel %vm1968, %v1941, %v1202
        %v1976 = vsel %vm1968, %v1943, %v1204
        %v1978 = vsel %vm1968, %v1945, %v1206
        %v1980 = vsel %vm1968, %v1947, %v1208
        %v1982 = vsel %vm1968, %v1949, %v1210
        %v1984 = vsel %vm1968, %v1951, %v1212
        %v1986 = vsel %vm1968, %v1953, %v1214
        %v1988 = vsel %vm1968, %v1955, %v1216
        %v1990 = vsel %vm1968, %v1957, %v1218
        %v1992 = vsel %vm1968, %v1959, %v1220
        %v1994 = vsel %vm1968, %v1961, %v1222
        %v1996 = vsel %vm1968, %v1963, %v1224
        %v1998 = vsel %vm1968, %v1965, %v1226
        %v2000 = vsel %vm1968, %v1967, %v1228
        %vm2001 = vcmask 162816
        %v2003 = vsel %vm2001, %v1970, %v1326
        %v2005 = vsel %vm2001, %v1972, %v1328
        %v2007 = vsel %vm2001, %v1974, %v1330
        %v2009 = vsel %vm2001, %v1976, %v1332
        %v2011 = vsel %vm2001, %v1978, %v1334
        %v2013 = vsel %vm2001, %v1980, %v1336
        %v2015 = vsel %vm2001, %v1982, %v1338
        %v2017 = vsel %vm2001, %v1984, %v1340
        %v2019 = vsel %vm2001, %v1986, %v1342
        %v2021 = vsel %vm2001, %v1988, %v1344
        %v2023 = vsel %vm2001, %v1990, %v1346
        %v2025 = vsel %vm2001, %v1992, %v1348
        %v2027 = vsel %vm2001, %v1994, %v1350
        %v2029 = vsel %vm2001, %v1996, %v1352
        %v2031 = vsel %vm2001, %v1998, %v1354
        %v2033 = vsel %vm2001, %v2000, %v1356
        %vm2034 = vcmask 195584
        %v2036 = vsel %vm2034, %v2003, %v1438
        %v2038 = vsel %vm2034, %v2005, %v1440
        %v2040 = vsel %vm2034, %v2007, %v1442
        %v2042 = vsel %vm2034, %v2009, %v1444
        %v2044 = vsel %vm2034, %v2011, %v1446
        %v2046 = vsel %vm2034, %v2013, %v1448
        %v2048 = vsel %vm2034, %v2015, %v1450
        %v2050 = vsel %vm2034, %v2017, %v1452
        %v2052 = vsel %vm2034, %v2019, %v1454
        %v2054 = vsel %vm2034, %v2021, %v1456
        %v2056 = vsel %vm2034, %v2023, %v1458
        %v2058 = vsel %vm2034, %v2025, %v1460
        %v2060 = vsel %vm2034, %v2027, %v1462
        %v2062 = vsel %vm2034, %v2029, %v1464
        %v2064 = vsel %vm2034, %v2031, %v1466
        %v2066 = vsel %vm2034, %v2033, %v1468
        %vm2067 = vcmask 228352
        %v2069 = vsel %vm2067, %v2036, %v1710
        %v2071 = vsel %vm2067, %v2038, %v1712
        %v2073 = vsel %vm2067, %v2040, %v1714
        %v2075 = vsel %vm2067, %v2042, %v1716
        %v2077 = vsel %vm2067, %v2044, %v1718
        %v2079 = vsel %vm2067, %v2046, %v1720
        %v2081 = vsel %vm2067, %v2048, %v1722
        %v2083 = vsel %vm2067, %v2050, %v1724
        %v2085 = vsel %vm2067, %v2052, %v1726
        %v2087 = vsel %vm2067, %v2054, %v1728
        %v2089 = vsel %vm2067, %v2056, %v1730
        %v2091 = vsel %vm2067, %v2058, %v1732
        %v2093 = vsel %vm2067, %v2060, %v1734
        %v2095 = vsel %vm2067, %v2062, %v1736
        %v2097 = vsel %vm2067, %v2064, %v1738
        %v2099 = vsel %vm2067, %v2066, %v1740
        %vm2100 = vcmask 261120
        %v2102 = vsel %vm2100, %v2069, %v1838
        %v2104 = vsel %vm2100, %v2071, %v1840
        %v2106 = vsel %vm2100, %v2073, %v1842
        %v2108 = vsel %vm2100, %v2075, %v1844
        %v2110 = vsel %vm2100, %v2077, %v1846
        %v2112 = vsel %vm2100, %v2079, %v1848
        %v2114 = vsel %vm2100, %v2081, %v1850
        %v2116 = vsel %vm2100, %v2083, %v1852
        %v2118 = vsel %vm2100, %v2085, %v1854
        %v2120 = vsel %vm2100, %v2087, %v1856
        %v2122 = vsel %vm2100, %v2089, %v1858
        %v2124 = vsel %vm2100, %v2091, %v1860
        %v2126 = vsel %vm2100, %v2093, %v1862
        %v2128 = vsel %vm2100, %v2095, %v1864
        %v2130 = vsel %vm2100, %v2097, %v1866
        %v2132 = vsel %vm2100, %v2099, %v1868
        %v2133 = vld [vmem:[%s1] sm:$0xf]
        %v2134 = vld [vmem:[%s2] sm:$0xff]
        %2136 = vset.pattern.permute.xlu0 0
        %2137 = vperm.xlu0 %2136, %v2134
        %v2138 = vpop.permute.xlu0 %2137
        %vm2140 = vcmask 293888
        %v2142 = vsel %vm2140, %v2133, 0
        %v2144 = vsel %vm2140, %v2102, 0
        %v2146 = vsel %vm2140, %v2104, 0
        %v2148 = vsel %vm2140, %v2106, 0
        %v2150 = vsel %vm2140, %v2108, 0
        %v2152 = vsel %vm2140, %v2110, 0
        %v2154 = vsel %vm2140, %v2112, 0
        %v2156 = vsel %vm2140, %v2114, 0
        %v2158 = vsel %vm2140, %v2116, 0
        %v2160 = vsel %vm2140, %v2118, 0
        %v2162 = vsel %vm2140, %v2120, 0
        %v2164 = vsel %vm2140, %v2122, 0
        %v2166 = vsel %vm2140, %v2124, 0
        %v2168 = vsel %vm2140, %v2126, 0
        %v2170 = vsel %vm2140, %v2128, 0
        %v2172 = vsel %vm2140, %v2130, 0
        %v2174 = vsel %vm2140, %v2132, 0
        %2176 = vmatpush.bf16.xpose.msra.mxu0 %v2158
        %2177 = vmatpush.bf16.xpose.msra.mxu0 %v2156
        %2178 = vmatpush.bf16.xpose.msra.mxu0 %v2154
        %2179 = vmatpush.bf16.xpose.msra.mxu0 %v2152
        %2180 = vmatpush.bf16.xpose.msra.mxu0 %v2150
        %2181 = vmatpush.bf16.xpose.msra.mxu0 %v2148
        %2182 = vmatpush.bf16.xpose.msra.mxu0 %v2146
        %2183 = vmatpush.bf16.xpose.msra.mxu0 %v2144
        %2184 = vmatmul.bf16.gmra.mxu0 %v2142
        %v2185 = vpop.f32.mrf.mxu0
        %v2186 = vadd.f32 %v2138, %v2185
        %v2187 = vpop.f32.mrf.mxu0
        %2188 = vdwg.mxu0
        %2189 = vmatpush.bf16.xpose.msra.mxu0 %v2174
        %2190 = vmatpush.bf16.xpose.msra.mxu0 %v2172
        %2191 = vmatpush.bf16.xpose.msra.mxu0 %v2170
        %2192 = vmatpush.bf16.xpose.msra.mxu0 %v2168
        %2193 = vmatpush.bf16.xpose.msra.mxu0 %v2166
        %2194 = vmatpush.bf16.xpose.msra.mxu0 %v2164
        %2195 = vmatpush.bf16.xpose.msra.mxu0 %v2162
        %2196 = vmatpush.bf16.xpose.msra.mxu0 %v2160
        %2197 = vmatmul.bf16.gmra.mxu0 %v2142
        %v2198 = vpop.f32.mrf.mxu0
        %v2199 = vadd.f32 %v2138, %v2198
        %v2200 = vpop.f32.mrf.mxu0
        %2201 = vdwg.mxu0
        %v2202 = vmax.f32 %v2186, 0.0
        %v2203 = vmax.f32 %v2199, 0.0
        %v2204 = vpack.c.bf16 %v2203, %v2202
        %2205 = vst [vmem:[%s163] sm:$0xff] %v2204
        %s2206 = sand.u32 %s93, 1
        %s2207 = scalar_lea.sflag [#allocation3], %s2206
        %s2208 = sand.u32 %s93, 1
        %s2209 = smul.addr %s2208, 8
        %s2210 = scalar_lea.vmem [#allocation2], %s2209
        // Predicated region
        $region33: #{tpu_custom_call.1} parent=31 // pred_check
          %p2211 = pneg %p103
        $region34: #{tpu_custom_call.1} parent=31 // pred_check_branch
          %2213 = sbr.rel (%p2211) target = $region36
        $region35: #{tpu_custom_call.1} parent=31 // pred_region
          %2215 = vsyncadd %s2207, 0
          %s2216 = smul.addr %s17, 2
          %s2217 = smul.addr %s2216, 4
          %s2218 = scalar_lea.hbm %s3, %s2217
          %s2220 = sshll.u32 %s2210, 4
          %s2221 = int_to_ptr.vmem [resolvable:$true] %s2220
          %s2222 = sshll.u32 %s2218, 4
          %s2223 = int_to_ptr.hbm [resolvable:$true] %s2222
          %2225 = dma.vmem_to_hbm [thread:$0]  %s2221, 128, %s2223, %s2207
        $region36: #{tpu_custom_call.1} parent=31 // pred_fallthru
          _
      $region32: #{tpu_custom_call.1} parent=5 // pred_fallthru
        _
      %p2226 = scmp.le.s32.totalorder 2, %s12
      // Predicated region
      $region37: #{tpu_custom_call.1} parent=5 // pred_check
        %p2227 = pneg %p2226
      $region38: #{tpu_custom_call.1} parent=5 // pred_check_branch
        %2229 = sbr.rel (%p2227) target = $region40
      $region39: #{tpu_custom_call.1} parent=5 // pred_region
        %s2230 = ssub.s32 %s12, 2
        // Predicated region
        $region41: #{tpu_custom_call.1} parent=39 // pred_check
          %p2231 = pneg %p109
        $region42: #{tpu_custom_call.1} parent=39 // pred_check_branch
          %2233 = sbr.rel (%p2231) target = $region44
        $region43: #{tpu_custom_call.1} parent=39 // pred_region
          %s2234 = sand.u32 %s94, 1
          %s2235 = scalar_lea.sflag [#allocation3], %s2234
          %s2236 = sand.u32 %s94, 1
          %s2237 = smul.addr %s2236, 8
          %s2238 = scalar_lea.vmem [#allocation2], %s2237
          %2240 = dma.done %s2235, 128
        $region44: #{tpu_custom_call.1} parent=39 // pred_fallthru
          _
      $region40: #{tpu_custom_call.1} parent=5 // pred_fallthru
        _
    $region6: #{tpu_custom_call.1} parent=1 // loop_footer
      %s16 = sadd.s32 1, %s12
    $region7: #{tpu_custom_call.1} parent=1 // loop_footer_branch
      %11 = sbr.rel target = $region3
    $region8: #{tpu_custom_call.1} parent=1 // loop_exit
      _
    %2241 = vsyncpa [#allocation3], 1
    %s2242 = scalar_lea.sflag [#allocation3], 1
    %2243 = vsyncpa %s2242, 1

</llo_original>
